<compile_context>
chip_gen: v6e
topology: v6e:2x2x1
jax: 0.10.0
libtpu: 0.0.40
codegen_flags: <defaults>
</compile_context>

<pallas_src>
import functools
import numpy as np
import jax
import jax.numpy as jnp
from jax import lax
from jax.experimental import pallas as pl
from jax.experimental.pallas import tpu as pltpu  # noqa: F401  (TPU backend)

WINDOW = 15            # DQN.WINDOW_SIZE
KSIZE = 3
POOL = WINDOW // 2     # 7  (MaxPool2d(2,2), floor)
NPOS = POOL * POOL     # 49 pooled positions per channel
NTAP = 4               # the four 2x2-window taps
LANE = 128
PPAD = LANE            # pooled positions padded 49 -> 128 (vreg-aligned tap blocks)
LEAKY_SLOPE = 0.01     # nn.LeakyReLU default negative_slope


def _round_up(x, m):
    return ((x + m - 1) // m) * m


def _leaky(x):
    return jnp.where(x > 0, x, LEAKY_SLOPE * x)


# --------------- fused conv + pool + 3-layer MLP kernel (whole batch) --------------
def dqn_fused_kernel(batch,
                     pm_ref, s_ref, wc_ref, bc_ref,
                     w1f_ref, w1s_ref, b1_ref, w2_ref, b2_ref, w3_ref, b3_ref,
                     o_ref):
    cout = wc_ref.shape[0]
    bl = batch * PPAD                                   # lanes per tap block

    # ---- conv (+bias +LeakyReLU) + 2x2 max-pool: ONE MXU matmul for everything ----
    conv = jnp.dot(wc_ref[...], pm_ref[...],
                   preferred_element_type=jnp.float32)   # (Cout, NTAP*B*128)
    pooled = conv[:, 0:bl]
    for t in range(1, NTAP):                             # lane-aligned tap slices
        pooled = jnp.maximum(pooled, conv[:, t * bl:(t + 1) * bl])
    # per-channel bias + monotone LeakyReLU commute with the max -> applied once
    pooled = _leaky(pooled + bc_ref[...])                # (Cout, B*128)

    # ---- fc1: cat((fw, s), 1) @ W1 ------------------------------------------------
    # Conv part: one channel-batched contraction per sample (batch dim = channels,
    # K = 128 padded positions); padded positions hit zero W1 rows -> inert.
    w1f = w1f_ref[...]                                   # (Cout, 128, HPAD)
    rows = []
    for b in range(batch):
        pb = pooled[:, b * PPAD:(b + 1) * PPAD]          # (Cout, 128), lane-aligned
        part = jnp.einsum('cmp,cph->cmh', pb.reshape(cout, 1, PPAD), w1f,
                          preferred_element_type=jnp.float32)   # (Cout, 1, HPAD)
        rows.append(jnp.sum(part, axis=0))                       # (1, HPAD)
    h_fw = rows[0] if batch == 1 else jnp.concatenate(rows, axis=0)  # (B, HPAD)

    h = h_fw + jnp.dot(s_ref[...], w1s_ref[...],
                       preferred_element_type=jnp.float32) + b1_ref[...]
    h = _leaky(h)

    # ---- fc2 (ReLU) + fc3 (lane-dense 128-wide padded output) ----------------------
    h = jnp.dot(h, w2_ref[...], preferred_element_type=jnp.float32) + b2_ref[...]
    h = jnp.maximum(h, 0.0)
    o_ref[...] = (jnp.dot(h, w3_ref[...], preferred_element_type=jnp.float32)
                  + b3_ref[...])


# ------------------------------------ wrapper --------------------------------------
@jax.jit
def dqn_forward(s, w, params):
    B, Cin, _, _ = w.shape
    conv_w = params["conv_w"]                 # (Cout, Cin, 3, 3)
    conv_b = params["conv_b"]                 # (Cout,)
    Cout = conv_w.shape[0]
    n_obs = s.shape[1]
    hidden = params["w1"].shape[1]
    h2 = params["w2"].shape[1]
    n_actions = params["w3"].shape[1]
    f1 = Cout * NPOS
    kdim = Cin * KSIZE * KSIZE                # 36
    HPAD = _round_up(hidden, LANE)
    H2PAD = _round_up(h2, LANE)
    NOUT = _round_up(n_actions, LANE)

    # im2col, tap-major & lane-padded:
    #   pm[k, t*(B*128) + b*128 + (i*7+j)] = padded_w[b, ci, 2i+di+ky, 2j+dj+kx]
    #   with k = ci*9 + ky*3 + kx and t = di*2 + dj.
    wp = jnp.pad(w, ((0, 0), (0, 0), (1, 1), (1, 1)))              # (B, Cin, 17, 17)
    blocks = jnp.stack([wp[:, :, ky:ky + 2 * POOL, kx:kx + 2 * POOL]
                        for ky in range(KSIZE) for kx in range(KSIZE)],
                       axis=2)                                      # (B, Cin, 9, 14, 14)
    blocks = blocks.reshape(B, Cin, KSIZE * KSIZE, POOL, 2, POOL, 2)
    pm = jnp.transpose(blocks, (4, 6, 0, 1, 2, 3, 5))               # (di,dj,B,Cin,kk,i,j)
    pm = pm.reshape(NTAP, B, kdim, NPOS)
    pm = jnp.pad(pm, ((0, 0), (0, 0), (0, 0), (0, PPAD - NPOS)))    # pad 49 -> 128
    pm = jnp.transpose(pm, (2, 0, 1, 3)).reshape(kdim, NTAP * B * PPAD)

    wc = conv_w.reshape(Cout, kdim)                                 # (Cout, 36)
    bc = conv_b.reshape(Cout, 1)

    w1 = params["w1"]
    w1f3 = jnp.pad(w1[:f1].reshape(Cout, NPOS, hidden),
                   ((0, 0), (0, PPAD - NPOS), (0, HPAD - hidden)))  # (Cout,128,HPAD)
    w1s = jnp.pad(w1[f1:], ((0, 0), (0, HPAD - hidden)))            # (n_obs, HPAD)
    b1 = jnp.pad(params["b1"].reshape(1, hidden), ((0, 0), (0, HPAD - hidden)))
    w2 = jnp.pad(params["w2"], ((0, HPAD - hidden), (0, H2PAD - h2)))
    b2 = jnp.pad(params["b2"].reshape(1, h2), ((0, 0), (0, H2PAD - h2)))
    w3 = jnp.pad(params["w3"], ((0, H2PAD - h2), (0, NOUT - n_actions)))
    b3 = jnp.pad(params["b3"].reshape(1, n_actions), ((0, 0), (0, NOUT - n_actions)))

    flops = 2 * (Cout * kdim * NTAP * B * PPAD + B * Cout * PPAD * HPAD
                 + B * n_obs * HPAD + B * HPAD * H2PAD + B * H2PAD * NOUT)
    bytes_accessed = 4 * (pm.size + s.size + wc.size + bc.size + w1f3.size
                          + w1s.size + b1.size + w2.size + b2.size + w3.size
                          + b3.size + B * NOUT)

    # Whole problem (<1 MiB resident) runs as a single grid-less invocation with all
    # operands VMEM-resident — no per-step overhead, batched MXU M dimension.
    out = pl.pallas_call(
        functools.partial(dqn_fused_kernel, B),
        out_shape=jax.ShapeDtypeStruct((B, NOUT), jnp.float32),
        cost_estimate=pl.CostEstimate(flops=flops, transcendentals=0,
                                      bytes_accessed=bytes_accessed),
    )(pm, s, wc, bc, w1f3, w1s, b1, w2, b2, w3, b3)

    return out[:, :n_actions]


# --------------------------- parameter init ----------------------------------------
def init_params(key, in_channels, n_obs, n_actions, h_channels, hidden_dim):
    ks = jax.random.split(key, 8)

    def u(k, shape, fan_in):
        bound = 1.0 / np.sqrt(float(fan_in))
        return jax.random.uniform(k, shape, jnp.float32, -bound, bound)

    f1 = h_channels * (WINDOW // 2) * (WINDOW // 2)
    input_dim = f1 + n_obs
    return {
        "conv_w": u(ks[0], (h_channels, in_channels, KSIZE, KSIZE), in_channels * 9),
        "conv_b": u(ks[1], (h_channels,), in_channels * 9),
        "w1": u(ks[2], (input_dim, hidden_dim), input_dim),
        "b1": u(ks[3], (hidden_dim,), input_dim),
        "w2": u(ks[4], (hidden_dim, hidden_dim // 2), hidden_dim),
        "b2": u(ks[5], (hidden_dim // 2,), hidden_dim),
        "w3": u(ks[6], (hidden_dim // 2, n_actions), hidden_dim),
        "b3": u(ks[7], (n_actions,), hidden_dim // 2),
    }


# ------------------------- pure-JAX reference ---------------------------------------
def reference_forward(s, w, params):
    hp = lax.Precision.HIGHEST
    conv = lax.conv_general_dilated(
        w, params["conv_w"], window_strides=(1, 1), padding=((1, 1), (1, 1)),
        dimension_numbers=("NCHW", "OIHW", "NCHW"), precision=hp)
    conv = conv + params["conv_b"][None, :, None, None]
    conv = _leaky(conv)
    pooled = lax.reduce_window(conv, -jnp.inf, lax.max,
                               (1, 1, 2, 2), (1, 1, 2, 2), "VALID")
    fw = pooled.reshape(pooled.shape[0], -1)
    y = jnp.concatenate([fw, s], axis=1)
    h = _leaky(jnp.dot(y, params["w1"], precision=hp) + params["b1"])
    h = jnp.maximum(jnp.dot(h, params["w2"], precision=hp) + params["b2"], 0.0)
    return jnp.dot(h, params["w3"], precision=hp) + params["b3"]


if __name__ == "__main__":
    B, Cin, Cout = 2, 4, 8          # batch, in_channels, h_channels
    n_obs, n_actions, hidden = 6, 5, 32

    key = jax.random.PRNGKey(0)
    k_s, k_w, k_p = jax.random.split(key, 3)
    s = jax.random.normal(k_s, (B, n_obs), jnp.float32)
    w = jax.random.normal(k_w, (B, Cin, WINDOW, WINDOW), jnp.float32)
    params = init_params(k_p, Cin, n_obs, n_actions, Cout, hidden)

    out = jax.block_until_ready(dqn_forward(s, w, params))
    ref = jax.block_until_ready(reference_forward(s, w, params))

    assert out.shape == (B, n_actions), out.shape
    assert bool(jnp.all(jnp.isfinite(out)))
    np.testing.assert_allclose(np.asarray(out), np.asarray(ref), rtol=2e-2, atol=2e-2)
    print("KERNEL_OK")
</pallas_src>

<mosaic_0001>
module attributes {stable_mosaic.version = 11 : i64} {
  func.func @dqn_fused_kernel(%arg0: memref<36x1024xf32, #tpu.memory_space<vmem>>, %arg1: memref<2x6xf32, #tpu.memory_space<vmem>>, %arg2: memref<8x36xf32, #tpu.memory_space<vmem>>, %arg3: memref<8x1xf32, #tpu.memory_space<vmem>>, %arg4: memref<8x128x128xf32, #tpu.memory_space<vmem>>, %arg5: memref<6x128xf32, #tpu.memory_space<vmem>>, %arg6: memref<1x128xf32, #tpu.memory_space<vmem>>, %arg7: memref<128x128xf32, #tpu.memory_space<vmem>>, %arg8: memref<1x128xf32, #tpu.memory_space<vmem>>, %arg9: memref<128x128xf32, #tpu.memory_space<vmem>>, %arg10: memref<1x128xf32, #tpu.memory_space<vmem>>, %arg11: memref<2x128xf32, #tpu.memory_space<vmem>>) attributes {dimension_semantics = [], scalar_prefetch = 0 : i64, scratch_operands = 0 : i64, tpu.core_type = #tpu.core_type<tc>} {
    %c0 = arith.constant 0 : index
    %c0_0 = arith.constant 0 : index
    %0 = vector.load %arg2[%c0, %c0_0] : memref<8x36xf32, #tpu.memory_space<vmem>>, vector<8x36xf32>
    %c0_1 = arith.constant 0 : index
    %c0_2 = arith.constant 0 : index
    %1 = vector.load %arg0[%c0_1, %c0_2] : memref<36x1024xf32, #tpu.memory_space<vmem>>, vector<36x1024xf32>
    %cst = arith.constant dense<0.000000e+00> : vector<8x1024xf32>
    %2 = tpu.matmul %0, %1, %cst {dimension_numbers = #tpu.dot_dimension_numbers<[1], [0], [0], [1], [0, 0, 1, 1], [], []>} : vector<8x36xf32>, vector<36x1024xf32>, vector<8x1024xf32> -> vector<8x1024xf32>
    %3 = vector.extract_strided_slice %2 {offsets = [0, 0], sizes = [8, 256], strides = [1, 1]} : vector<8x1024xf32> to vector<8x256xf32>
    %4 = vector.extract_strided_slice %2 {offsets = [0, 256], sizes = [8, 256], strides = [1, 1]} : vector<8x1024xf32> to vector<8x256xf32>
    %5 = arith.maximumf %3, %4 : vector<8x256xf32>
    %6 = vector.extract_strided_slice %2 {offsets = [0, 512], sizes = [8, 256], strides = [1, 1]} : vector<8x1024xf32> to vector<8x256xf32>
    %7 = arith.maximumf %5, %6 : vector<8x256xf32>
    %8 = vector.extract_strided_slice %2 {offsets = [0, 768], sizes = [8, 256], strides = [1, 1]} : vector<8x1024xf32> to vector<8x256xf32>
    %9 = arith.maximumf %7, %8 : vector<8x256xf32>
    %c0_3 = arith.constant 0 : index
    %c0_4 = arith.constant 0 : index
    %10 = vector.load %arg3[%c0_3, %c0_4] : memref<8x1xf32, #tpu.memory_space<vmem>>, vector<8x1xf32>
    %11 = vector.broadcast %10 : vector<8x1xf32> to vector<8x256xf32>
    %12 = arith.addf %9, %11 : vector<8x256xf32>
    %cst_5 = arith.constant 0.000000e+00 : f32
    %13 = vector.broadcast %cst_5 : f32 to vector<8x256xf32>
    %14 = arith.cmpf ogt, %12, %13 : vector<8x256xf32>
    %cst_6 = arith.constant 0.00999999977 : f32
    %15 = vector.broadcast %cst_6 : f32 to vector<8x256xf32>
    %16 = arith.mulf %15, %12 : vector<8x256xf32>
    %17 = arith.select %14, %12, %16 : vector<8x256xi1>, vector<8x256xf32>
    %c0_7 = arith.constant 0 : index
    %c0_8 = arith.constant 0 : index
    %c0_9 = arith.constant 0 : index
    %18 = vector.load %arg4[%c0_7, %c0_8, %c0_9] : memref<8x128x128xf32, #tpu.memory_space<vmem>>, vector<8x128x128xf32>
    %19 = vector.extract_strided_slice %17 {offsets = [0, 0], sizes = [8, 128], strides = [1, 1]} : vector<8x256xf32> to vector<8x128xf32>
    %20 = vector.shape_cast %19 : vector<8x128xf32> to vector<8x1x128xf32>
    "tpu.trace_start"() <{level = 10 : i32, message = "cmp,cph->cmh"}> : () -> ()
    %cst_10 = arith.constant dense<0.000000e+00> : vector<8x1x128xf32>
    %21 = tpu.matmul %20, %18, %cst_10 {dimension_numbers = #tpu.dot_dimension_numbers<[2], [1], [1], [2], [0, 0, 0, 1, 1, 2], [0], [0]>} : vector<8x1x128xf32>, vector<8x128x128xf32>, vector<8x1x128xf32> -> vector<8x1x128xf32>
    "tpu.trace_stop"() : () -> ()
    %cst_11 = arith.constant dense<0.000000e+00> : vector<1x128xf32>
    %22 = vector.multi_reduction <add>, %21, %cst_11 [0] : vector<8x1x128xf32> to vector<1x128xf32>
    %23 = vector.extract_strided_slice %17 {offsets = [0, 128], sizes = [8, 128], strides = [1, 1]} : vector<8x256xf32> to vector<8x128xf32>
    %24 = vector.shape_cast %23 : vector<8x128xf32> to vector<8x1x128xf32>
    "tpu.trace_start"() <{level = 10 : i32, message = "cmp,cph->cmh"}> : () -> ()
    %cst_12 = arith.constant dense<0.000000e+00> : vector<8x1x128xf32>
    %25 = tpu.matmul %24, %18, %cst_12 {dimension_numbers = #tpu.dot_dimension_numbers<[2], [1], [1], [2], [0, 0, 0, 1, 1, 2], [0], [0]>} : vector<8x1x128xf32>, vector<8x128x128xf32>, vector<8x1x128xf32> -> vector<8x1x128xf32>
    "tpu.trace_stop"() : () -> ()
    %cst_13 = arith.constant dense<0.000000e+00> : vector<1x128xf32>
    %26 = vector.multi_reduction <add>, %25, %cst_13 [0] : vector<8x1x128xf32> to vector<1x128xf32>
    %27 = tpu.concatenate %22, %26 in 0 : vector<1x128xf32>, vector<1x128xf32> -> vector<2x128xf32>
    %c0_14 = arith.constant 0 : index
    %c0_15 = arith.constant 0 : index
    %28 = vector.load %arg1[%c0_14, %c0_15] : memref<2x6xf32, #tpu.memory_space<vmem>>, vector<2x6xf32>
    %c0_16 = arith.constant 0 : index
    %c0_17 = arith.constant 0 : index
    %29 = vector.load %arg5[%c0_16, %c0_17] : memref<6x128xf32, #tpu.memory_space<vmem>>, vector<6x128xf32>
    %cst_18 = arith.constant dense<0.000000e+00> : vector<2x128xf32>
    %30 = tpu.matmul %28, %29, %cst_18 {dimension_numbers = #tpu.dot_dimension_numbers<[1], [0], [0], [1], [0, 0, 1, 1], [], []>} : vector<2x6xf32>, vector<6x128xf32>, vector<2x128xf32> -> vector<2x128xf32>
    %31 = arith.addf %27, %30 : vector<2x128xf32>
    %c0_19 = arith.constant 0 : index
    %c0_20 = arith.constant 0 : index
    %32 = vector.load %arg6[%c0_19, %c0_20] : memref<1x128xf32, #tpu.memory_space<vmem>>, vector<1x128xf32>
    %33 = vector.broadcast %32 : vector<1x128xf32> to vector<2x128xf32>
    %34 = arith.addf %31, %33 : vector<2x128xf32>
    %cst_21 = arith.constant 0.000000e+00 : f32
    %35 = vector.broadcast %cst_21 : f32 to vector<2x128xf32>
    %36 = arith.cmpf ogt, %34, %35 : vector<2x128xf32>
    %cst_22 = arith.constant 0.00999999977 : f32
    %37 = vector.broadcast %cst_22 : f32 to vector<2x128xf32>
    %38 = arith.mulf %37, %34 : vector<2x128xf32>
    %39 = arith.select %36, %34, %38 : vector<2x128xi1>, vector<2x128xf32>
    %c0_23 = arith.constant 0 : index
    %c0_24 = arith.constant 0 : index
    %40 = vector.load %arg7[%c0_23, %c0_24] : memref<128x128xf32, #tpu.memory_space<vmem>>, vector<128x128xf32>
    %cst_25 = arith.constant dense<0.000000e+00> : vector<2x128xf32>
    %41 = tpu.matmul %39, %40, %cst_25 {dimension_numbers = #tpu.dot_dimension_numbers<[1], [0], [0], [1], [0, 0, 1, 1], [], []>} : vector<2x128xf32>, vector<128x128xf32>, vector<2x128xf32> -> vector<2x128xf32>
    %c0_26 = arith.constant 0 : index
    %c0_27 = arith.constant 0 : index
    %42 = vector.load %arg8[%c0_26, %c0_27] : memref<1x128xf32, #tpu.memory_space<vmem>>, vector<1x128xf32>
    %43 = vector.broadcast %42 : vector<1x128xf32> to vector<2x128xf32>
    %44 = arith.addf %41, %43 : vector<2x128xf32>
    %cst_28 = arith.constant 0.000000e+00 : f32
    %45 = vector.broadcast %cst_28 : f32 to vector<2x128xf32>
    %46 = arith.maximumf %44, %45 : vector<2x128xf32>
    %c0_29 = arith.constant 0 : index
    %c0_30 = arith.constant 0 : index
    %47 = vector.load %arg9[%c0_29, %c0_30] : memref<128x128xf32, #tpu.memory_space<vmem>>, vector<128x128xf32>
    %cst_31 = arith.constant dense<0.000000e+00> : vector<2x128xf32>
    %48 = tpu.matmul %46, %47, %cst_31 {dimension_numbers = #tpu.dot_dimension_numbers<[1], [0], [0], [1], [0, 0, 1, 1], [], []>} : vector<2x128xf32>, vector<128x128xf32>, vector<2x128xf32> -> vector<2x128xf32>
    %c0_32 = arith.constant 0 : index
    %c0_33 = arith.constant 0 : index
    %49 = vector.load %arg10[%c0_32, %c0_33] : memref<1x128xf32, #tpu.memory_space<vmem>>, vector<1x128xf32>
    %50 = vector.broadcast %49 : vector<1x128xf32> to vector<2x128xf32>
    %51 = arith.addf %48, %50 : vector<2x128xf32>
    %c0_34 = arith.constant 0 : index
    %c0_35 = arith.constant 0 : index
    %52 = vector.load %arg11[%c0_34, %c0_35] : memref<2x128xf32, #tpu.memory_space<vmem>>, vector<2x128xf32>
    tpu.vector_store %arg11[%c0_34, %c0_35], %51 {strides = array<i32>} : memref<2x128xf32, #tpu.memory_space<vmem>>, vector<2x128xf32>,
    return
  }
}

</mosaic_0001>

<llo_original>
// kernel: dqn_forward.1
$region0: #{dqn_forward.1}
  #allocation0 [shape = 'u32[]', space=smem, size = 0x4, offset = 0x4, fixed_abs, tag = 'smem constant byte address 0x4 - core index']
  #allocation1 [shape = 'u32[144,128]{1,0:T(1,128)}', space=vmem, size = 0x12000, scoped, tag = 'internal scratch']
  %s0 = inlined_call_operand.vmem [shape: f32[36,1024], index: 0, kind: input, shape index: {}]
  %s1 = inlined_call_operand.vmem [shape: f32[2,6], index: 1, kind: input, shape index: {}]
  %s2 = inlined_call_operand.vmem [shape: f32[8,36], index: 2, kind: input, shape index: {}]
  %s3 = inlined_call_operand.vmem [shape: f32[8,1], index: 3, kind: input, shape index: {}]
  %s4 = inlined_call_operand.vmem [shape: f32[8,128,128], index: 4, kind: input, shape index: {}]
  %s5 = inlined_call_operand.vmem [shape: f32[6,128], index: 5, kind: input, shape index: {}]
  %s6 = inlined_call_operand.vmem [shape: f32[1,128], index: 6, kind: input, shape index: {}]
  %s7 = inlined_call_operand.vmem [shape: f32[128,128], index: 7, kind: input, shape index: {}]
  %s8 = inlined_call_operand.vmem [shape: f32[1,128], index: 8, kind: input, shape index: {}]
  %s9 = inlined_call_operand.vmem [shape: f32[128,128], index: 9, kind: input, shape index: {}]
  %s10 = inlined_call_operand.vmem [shape: f32[1,128], index: 10, kind: input, shape index: {}]
  %s11 = inlined_call_operand.hbm [shape: f32[2,128], index: 11, kind: output, shape index: {}]
  %s12 = sld [smem:[#allocation0]]
  $region54: #{dqn_forward.1} parent=0
    _
  %s14 = ssub.s32 1, %s12
  %s15 = scalar_select 0, %s14, %s12
  $region1: #{dqn_forward.1} parent=0
    #allocation2 [shape = 'u8[1024]{0}', space=vmem, size = 0x400, scoped, tag = 'output window, operand 0, single buffered']
    #allocation3 [shape = 's32[1]{0}', space=sflag, size = 0x4, scoped, tag = 'scoped memory for dqn_forward.1']
    %16 = vsyncpa [#allocation3], 0
    // Predicated region
    $region2: #{dqn_forward.1} parent=1 // pred_check
      _
    $region3: #{dqn_forward.1} parent=1 // pred_check_branch
      %18 = sbr.rel (0) target = $region5
    $region4: #{dqn_forward.1} parent=1 // pred_region
      _
    $region5: #{dqn_forward.1} parent=1 // pred_fallthru
      _
    // Predicated region
    $region6: #{dqn_forward.1} parent=1 // pred_check
      _
    $region7: #{dqn_forward.1} parent=1 // pred_check_branch
      %20 = sbr.rel (0) target = $region9
    $region8: #{dqn_forward.1} parent=1 // pred_region
      _
    $region9: #{dqn_forward.1} parent=1 // pred_fallthru
      _
    // Predicated region
    $region10: #{dqn_forward.1} parent=1 // pred_check
      _
    $region11: #{dqn_forward.1} parent=1 // pred_check_branch
      %22 = sbr.rel (0) target = $region13
    $region12: #{dqn_forward.1} parent=1 // pred_region
      _
    $region13: #{dqn_forward.1} parent=1 // pred_fallthru
      _
    // Predicated region
    $region14: #{dqn_forward.1} parent=1 // pred_check
      _
    $region15: #{dqn_forward.1} parent=1 // pred_check_branch
      %24 = sbr.rel (0) target = $region17
    $region16: #{dqn_forward.1} parent=1 // pred_region
      _
    $region17: #{dqn_forward.1} parent=1 // pred_fallthru
      _
    // Predicated region
    $region18: #{dqn_forward.1} parent=1 // pred_check
      _
    $region19: #{dqn_forward.1} parent=1 // pred_check_branch
      %26 = sbr.rel (0) target = $region21
    $region20: #{dqn_forward.1} parent=1 // pred_region
      _
    $region21: #{dqn_forward.1} parent=1 // pred_fallthru
      _
    // Predicated region
    $region22: #{dqn_forward.1} parent=1 // pred_check
      _
    $region23: #{dqn_forward.1} parent=1 // pred_check_branch
      %28 = sbr.rel (0) target = $region25
    $region24: #{dqn_forward.1} parent=1 // pred_region
      _
    $region25: #{dqn_forward.1} parent=1 // pred_fallthru
      _
    // Predicated region
    $region26: #{dqn_forward.1} parent=1 // pred_check
      _
    $region27: #{dqn_forward.1} parent=1 // pred_check_branch
      %30 = sbr.rel (0) target = $region29
    $region28: #{dqn_forward.1} parent=1 // pred_region
      _
    $region29: #{dqn_forward.1} parent=1 // pred_fallthru
      _
    // Predicated region
    $region30: #{dqn_forward.1} parent=1 // pred_check
      _
    $region31: #{dqn_forward.1} parent=1 // pred_check_branch
      %32 = sbr.rel (0) target = $region33
    $region32: #{dqn_forward.1} parent=1 // pred_region
      _
    $region33: #{dqn_forward.1} parent=1 // pred_fallthru
      _
    // Predicated region
    $region34: #{dqn_forward.1} parent=1 // pred_check
      _
    $region35: #{dqn_forward.1} parent=1 // pred_check_branch
      %34 = sbr.rel (0) target = $region37
    $region36: #{dqn_forward.1} parent=1 // pred_region
      _
    $region37: #{dqn_forward.1} parent=1 // pred_fallthru
      _
    // Predicated region
    $region38: #{dqn_forward.1} parent=1 // pred_check
      _
    $region39: #{dqn_forward.1} parent=1 // pred_check_branch
      %36 = sbr.rel (0) target = $region41
    $region40: #{dqn_forward.1} parent=1 // pred_region
      _
    $region41: #{dqn_forward.1} parent=1 // pred_fallthru
      _
    // Predicated region
    $region42: #{dqn_forward.1} parent=1 // pred_check
      _
    $region43: #{dqn_forward.1} parent=1 // pred_check_branch
      %38 = sbr.rel (0) target = $region45
    $region44: #{dqn_forward.1} parent=1 // pred_region
      _
    $region45: #{dqn_forward.1} parent=1 // pred_fallthru
      _
    %v39 = vld [vmem:[%s2] sm:$0xff]
    %v40 = vld [vmem:[%s0] sm:$0xff]
    %v41 = vld [vmem:[%s0 + $0x8] sm:$0xff]
    %v42 = vld [vmem:[%s0 + $0x10] sm:$0xff]
    %v43 = vld [vmem:[%s0 + $0x18] sm:$0xff]
    %v44 = vld [vmem:[%s0 + $0x20] sm:$0xff]
    %v45 = vld [vmem:[%s0 + $0x28] sm:$0xff]
    %v46 = vld [vmem:[%s0 + $0x30] sm:$0xff]
    %v47 = vld [vmem:[%s0 + $0x38] sm:$0xff]
    %v48 = vld [vmem:[%s0 + $0x40] sm:$0xff]
    %v49 = vld [vmem:[%s0 + $0x48] sm:$0xff]
    %v50 = vld [vmem:[%s0 + $0x50] sm:$0xff]
    %v51 = vld [vmem:[%s0 + $0x58] sm:$0xff]
    %v52 = vld [vmem:[%s0 + $0x60] sm:$0xff]
    %v53 = vld [vmem:[%s0 + $0x68] sm:$0xff]
    %v54 = vld [vmem:[%s0 + $0x70] sm:$0xff]
    %v55 = vld [vmem:[%s0 + $0x78] sm:$0xff]
    %v56 = vld [vmem:[%s0 + $0x80] sm:$0xff]
    %v57 = vld [vmem:[%s0 + $0x88] sm:$0xff]
    %v58 = vld [vmem:[%s0 + $0x90] sm:$0xff]
    %v59 = vld [vmem:[%s0 + $0x98] sm:$0xff]
    %v60 = vld [vmem:[%s0 + $0xa0] sm:$0xff]
    %v61 = vld [vmem:[%s0 + $0xa8] sm:$0xff]
    %v62 = vld [vmem:[%s0 + $0xb0] sm:$0xff]
    %v63 = vld [vmem:[%s0 + $0xb8] sm:$0xff]
    %v64 = vld [vmem:[%s0 + $0xc0] sm:$0xff]
    %v65 = vld [vmem:[%s0 + $0xc8] sm:$0xff]
    %v66 = vld [vmem:[%s0 + $0xd0] sm:$0xff]
    %v67 = vld [vmem:[%s0 + $0xd8] sm:$0xff]
    %v68 = vld [vmem:[%s0 + $0xe0] sm:$0xff]
    %v69 = vld [vmem:[%s0 + $0xe8] sm:$0xff]
    %v70 = vld [vmem:[%s0 + $0xf0] sm:$0xff]
    %v71 = vld [vmem:[%s0 + $0xf8] sm:$0xff]
    %v72 = vld [vmem:[%s0 + $0x100] sm:$0xf]
    %v73 = vld [vmem:[%s0 + $0x108] sm:$0xf]
    %v74 = vld [vmem:[%s0 + $0x110] sm:$0xf]
    %v75 = vld [vmem:[%s0 + $0x118] sm:$0xf]
    %v76 = vld [vmem:[%s0 + $0x120] sm:$0xf]
    %v77 = vld [vmem:[%s0 + $0x128] sm:$0xf]
    %v78 = vld [vmem:[%s0 + $0x130] sm:$0xf]
    %v79 = vld [vmem:[%s0 + $0x138] sm:$0xf]
    %vm80 = vcmask 293888
    %v82 = vsel %vm80, %v39, 0
    %vm84 = vcmask 1043456
    %v86 = vsel %vm84, %v72, 0
    %v89 = vsel %vm84, %v73, 0
    %v92 = vsel %vm84, %v74, 0
    %v95 = vsel %vm84, %v75, 0
    %v98 = vsel %vm84, %v76, 0
    %v101 = vsel %vm84, %v77, 0
    %v104 = vsel %vm84, %v78, 0
    %v107 = vsel %vm84, %v79, 0
    %109 = vmatprep.subr.mxu0 0.0
    %110 = vmatpush1.msra.mxu0 0.0
    %111 = vmatprep.subr.mxu0 0.0
    %112 = vmatpush1.msra.mxu0 0.0
    %113 = vmatprep.subr.mxu0 0.0
    %114 = vmatpush1.msra.mxu0 0.0
    %115 = vmatprep.subr.mxu0 0.0
    %116 = vmatpush1.msra.mxu0 0.0
    %117 = vmatprep.subr.mxu0 0.0
    %118 = vmatpush1.msra.mxu0 0.0
    %119 = vmatprep.subr.mxu0 0.0
    %120 = vmatpush1.msra.mxu0 0.0
    %121 = vmatprep.subr.mxu0 0.0
    %122 = vmatpush1.msra.mxu0 0.0
    %123 = vmatprep.subr.mxu0 0.0
    %124 = vmatpush1.msra.mxu0 0.0
    %125 = vmatprep.subr.mxu0 0.0
    %126 = vmatpush1.msra.mxu0 0.0
    %127 = vmatprep.subr.mxu0 0.0
    %128 = vmatpush1.msra.mxu0 0.0
    %129 = vmatprep.subr.mxu0 0.0
    %130 = vmatpush1.msra.mxu0 0.0
    %131 = vmatprep.subr.mxu0 %v89
    %132 = vmatpush1.msra.mxu0 %v86
    %133 = vmatprep.subr.mxu0 %v65
    %134 = vmatpush1.msra.mxu0 %v64
    %135 = vmatprep.subr.mxu0 %v57
    %136 = vmatpush1.msra.mxu0 %v56
    %137 = vmatprep.subr.mxu0 %v49
    %138 = vmatpush1.msra.mxu0 %v48
    %139 = vmatprep.subr.mxu0 %v41
    %140 = vmatpush1.msra.mxu0 %v40
    %141 = vmatprep.subr.mxu0 0.0
    %142 = vmatpush2.msra.mxu0 0.0
    %143 = vmatprep.subr.mxu0 0.0
    %144 = vmatpush2.msra.mxu0 0.0
    %145 = vmatprep.subr.mxu0 0.0
    %146 = vmatpush2.msra.mxu0 0.0
    %147 = vmatprep.subr.mxu0 0.0
    %148 = vmatpush2.msra.mxu0 0.0
    %149 = vmatprep.subr.mxu0 0.0
    %150 = vmatpush2.msra.mxu0 0.0
    %151 = vmatprep.subr.mxu0 0.0
    %152 = vmatpush2.msra.mxu0 0.0
    %153 = vmatprep.subr.mxu0 0.0
    %154 = vmatpush2.msra.mxu0 0.0
    %155 = vmatprep.subr.mxu0 0.0
    %156 = vmatpush2.msra.mxu0 0.0
    %157 = vmatprep.subr.mxu0 0.0
    %158 = vmatpush2.msra.mxu0 0.0
    %159 = vmatprep.subr.mxu0 0.0
    %160 = vmatpush2.msra.mxu0 0.0
    %161 = vmatprep.subr.mxu0 0.0
    %162 = vmatpush2.msra.mxu0 0.0
    %163 = vmatprep.subr.mxu0 0.0
    %164 = vmatpush2.msra.mxu0 0.0
    %165 = vmatprep.subr.mxu0 0.0
    %166 = vmatpush2.msra.mxu0 0.0
    %167 = vmatprep.subr.mxu0 0.0
    %168 = vmatpush2.msra.mxu0 0.0
    %169 = vmatprep.subr.mxu0 0.0
    %170 = vmatpush2.msra.mxu0 0.0
    %171 = vmatprep.subr.mxu0 0.0
    %172 = vmatpush2.msra.mxu0 0.0
    %173 = vmatprep.mubr.f32.mxu0 0.0
    %174 = vmatmul.mubr.f32.gmra.mxu0 %v82
    %v175 = vpop.f32.mrf.mxu0
    %v176 = vadd.f32 0.0, %v175
    %v177 = vpop.f32.mrf.mxu0
    %v178 = vadd.f32 0.0, %v177
    %179 = vdwg.mxu0
    %180 = vmatprep.subr.mxu0 0.0
    %181 = vmatpush1.msra.mxu0 0.0
    %182 = vmatprep.subr.mxu0 0.0
    %183 = vmatpush1.msra.mxu0 0.0
    %184 = vmatprep.subr.mxu0 0.0
    %185 = vmatpush1.msra.mxu0 0.0
    %186 = vmatprep.subr.mxu0 0.0
    %187 = vmatpush1.msra.mxu0 0.0
    %188 = vmatprep.subr.mxu0 0.0
    %189 = vmatpush1.msra.mxu0 0.0
    %190 = vmatprep.subr.mxu0 0.0
    %191 = vmatpush1.msra.mxu0 0.0
    %192 = vmatprep.subr.mxu0 0.0
    %193 = vmatpush1.msra.mxu0 0.0
    %194 = vmatprep.subr.mxu0 0.0
    %195 = vmatpush1.msra.mxu0 0.0
    %196 = vmatprep.subr.mxu0 0.0
    %197 = vmatpush1.msra.mxu0 0.0
    %198 = vmatprep.subr.mxu0 0.0
    %199 = vmatpush1.msra.mxu0 0.0
    %200 = vmatprep.subr.mxu0 0.0
    %201 = vmatpush1.msra.mxu0 0.0
    %202 = vmatprep.subr.mxu0 %v95
    %203 = vmatpush1.msra.mxu0 %v92
    %204 = vmatprep.subr.mxu0 %v67
    %205 = vmatpush1.msra.mxu0 %v66
    %206 = vmatprep.subr.mxu0 %v59
    %207 = vmatpush1.msra.mxu0 %v58
    %208 = vmatprep.subr.mxu0 %v51
    %209 = vmatpush1.msra.mxu0 %v50
    %210 = vmatprep.subr.mxu0 %v43
    %211 = vmatpush1.msra.mxu0 %v42
    %212 = vmatprep.subr.mxu0 0.0
    %213 = vmatpush2.msra.mxu0 0.0
    %214 = vmatprep.subr.mxu0 0.0
    %215 = vmatpush2.msra.mxu0 0.0
    %216 = vmatprep.subr.mxu0 0.0
    %217 = vmatpush2.msra.mxu0 0.0
    %218 = vmatprep.subr.mxu0 0.0
    %219 = vmatpush2.msra.mxu0 0.0
    %220 = vmatprep.subr.mxu0 0.0
    %221 = vmatpush2.msra.mxu0 0.0
    %222 = vmatprep.subr.mxu0 0.0
    %223 = vmatpush2.msra.mxu0 0.0
    %224 = vmatprep.subr.mxu0 0.0
    %225 = vmatpush2.msra.mxu0 0.0
    %226 = vmatprep.subr.mxu0 0.0
    %227 = vmatpush2.msra.mxu0 0.0
    %228 = vmatprep.subr.mxu0 0.0
    %229 = vmatpush2.msra.mxu0 0.0
    %230 = vmatprep.subr.mxu0 0.0
    %231 = vmatpush2.msra.mxu0 0.0
    %232 = vmatprep.subr.mxu0 0.0
    %233 = vmatpush2.msra.mxu0 0.0
    %234 = vmatprep.subr.mxu0 0.0
    %235 = vmatpush2.msra.mxu0 0.0
    %236 = vmatprep.subr.mxu0 0.0
    %237 = vmatpush2.msra.mxu0 0.0
    %238 = vmatprep.subr.mxu0 0.0
    %239 = vmatpush2.msra.mxu0 0.0
    %240 = vmatprep.subr.mxu0 0.0
    %241 = vmatpush2.msra.mxu0 0.0
    %242 = vmatprep.subr.mxu0 0.0
    %243 = vmatpush2.msra.mxu0 0.0
    %244 = vmatprep.mubr.f32.mxu0 0.0
    %245 = vmatmul.mubr.f32.gmra.mxu0 %v82
    %v246 = vpop.f32.mrf.mxu0
    %v247 = vadd.f32 0.0, %v246
    %v248 = vpop.f32.mrf.mxu0
    %v249 = vadd.f32 0.0, %v248
    %250 = vdwg.mxu0
    %251 = vmatprep.subr.mxu0 0.0
    %252 = vmatpush1.msra.mxu0 0.0
    %253 = vmatprep.subr.mxu0 0.0
    %254 = vmatpush1.msra.mxu0 0.0
    %255 = vmatprep.subr.mxu0 0.0
    %256 = vmatpush1.msra.mxu0 0.0
    %257 = vmatprep.subr.mxu0 0.0
    %258 = vmatpush1.msra.mxu0 0.0
    %259 = vmatprep.subr.mxu0 0.0
    %260 = vmatpush1.msra.mxu0 0.0
    %261 = vmatprep.subr.mxu0 0.0
    %262 = vmatpush1.msra.mxu0 0.0
    %263 = vmatprep.subr.mxu0 0.0
    %264 = vmatpush1.msra.mxu0 0.0
    %265 = vmatprep.subr.mxu0 0.0
    %266 = vmatpush1.msra.mxu0 0.0
    %267 = vmatprep.subr.mxu0 0.0
    %268 = vmatpush1.msra.mxu0 0.0
    %269 = vmatprep.subr.mxu0 0.0
    %270 = vmatpush1.msra.mxu0 0.0
    %271 = vmatprep.subr.mxu0 0.0
    %272 = vmatpush1.msra.mxu0 0.0
    %273 = vmatprep.subr.mxu0 %v101
    %274 = vmatpush1.msra.mxu0 %v98
    %275 = vmatprep.subr.mxu0 %v69
    %276 = vmatpush1.msra.mxu0 %v68
    %277 = vmatprep.subr.mxu0 %v61
    %278 = vmatpush1.msra.mxu0 %v60
    %279 = vmatprep.subr.mxu0 %v53
    %280 = vmatpush1.msra.mxu0 %v52
    %281 = vmatprep.subr.mxu0 %v45
    %282 = vmatpush1.msra.mxu0 %v44
    %283 = vmatprep.subr.mxu0 0.0
    %284 = vmatpush2.msra.mxu0 0.0
    %285 = vmatprep.subr.mxu0 0.0
    %286 = vmatpush2.msra.mxu0 0.0
    %287 = vmatprep.subr.mxu0 0.0
    %288 = vmatpush2.msra.mxu0 0.0
    %289 = vmatprep.subr.mxu0 0.0
    %290 = vmatpush2.msra.mxu0 0.0
    %291 = vmatprep.subr.mxu0 0.0
    %292 = vmatpush2.msra.mxu0 0.0
    %293 = vmatprep.subr.mxu0 0.0
    %294 = vmatpush2.msra.mxu0 0.0
    %295 = vmatprep.subr.mxu0 0.0
    %296 = vmatpush2.msra.mxu0 0.0
    %297 = vmatprep.subr.mxu0 0.0
    %298 = vmatpush2.msra.mxu0 0.0
    %299 = vmatprep.subr.mxu0 0.0
    %300 = vmatpush2.msra.mxu0 0.0
    %301 = vmatprep.subr.mxu0 0.0
    %302 = vmatpush2.msra.mxu0 0.0
    %303 = vmatprep.subr.mxu0 0.0
    %304 = vmatpush2.msra.mxu0 0.0
    %305 = vmatprep.subr.mxu0 0.0
    %306 = vmatpush2.msra.mxu0 0.0
    %307 = vmatprep.subr.mxu0 0.0
    %308 = vmatpush2.msra.mxu0 0.0
    %309 = vmatprep.subr.mxu0 0.0
    %310 = vmatpush2.msra.mxu0 0.0
    %311 = vmatprep.subr.mxu0 0.0
    %312 = vmatpush2.msra.mxu0 0.0
    %313 = vmatprep.subr.mxu0 0.0
    %314 = vmatpush2.msra.mxu0 0.0
    %315 = vmatprep.mubr.f32.mxu0 0.0
    %316 = vmatmul.mubr.f32.gmra.mxu0 %v82
    %v317 = vpop.f32.mrf.mxu0
    %v318 = vadd.f32 0.0, %v317
    %v319 = vpop.f32.mrf.mxu0
    %v320 = vadd.f32 0.0, %v319
    %321 = vdwg.mxu0
    %322 = vmatprep.subr.mxu0 0.0
    %323 = vmatpush1.msra.mxu0 0.0
    %324 = vmatprep.subr.mxu0 0.0
    %325 = vmatpush1.msra.mxu0 0.0
    %326 = vmatprep.subr.mxu0 0.0
    %327 = vmatpush1.msra.mxu0 0.0
    %328 = vmatprep.subr.mxu0 0.0
    %329 = vmatpush1.msra.mxu0 0.0
    %330 = vmatprep.subr.mxu0 0.0
    %331 = vmatpush1.msra.mxu0 0.0
    %332 = vmatprep.subr.mxu0 0.0
    %333 = vmatpush1.msra.mxu0 0.0
    %334 = vmatprep.subr.mxu0 0.0
    %335 = vmatpush1.msra.mxu0 0.0
    %336 = vmatprep.subr.mxu0 0.0
    %337 = vmatpush1.msra.mxu0 0.0
    %338 = vmatprep.subr.mxu0 0.0
    %339 = vmatpush1.msra.mxu0 0.0
    %340 = vmatprep.subr.mxu0 0.0
    %341 = vmatpush1.msra.mxu0 0.0
    %342 = vmatprep.subr.mxu0 0.0
    %343 = vmatpush1.msra.mxu0 0.0
    %344 = vmatprep.subr.mxu0 %v107
    %345 = vmatpush1.msra.mxu0 %v104
    %346 = vmatprep.subr.mxu0 %v71
    %347 = vmatpush1.msra.mxu0 %v70
    %348 = vmatprep.subr.mxu0 %v63
    %349 = vmatpush1.msra.mxu0 %v62
    %350 = vmatprep.subr.mxu0 %v55
    %351 = vmatpush1.msra.mxu0 %v54
    %352 = vmatprep.subr.mxu0 %v47
    %353 = vmatpush1.msra.mxu0 %v46
    %354 = vmatprep.subr.mxu0 0.0
    %355 = vmatpush2.msra.mxu0 0.0
    %356 = vmatprep.subr.mxu0 0.0
    %357 = vmatpush2.msra.mxu0 0.0
    %358 = vmatprep.subr.mxu0 0.0
    %359 = vmatpush2.msra.mxu0 0.0
    %360 = vmatprep.subr.mxu0 0.0
    %361 = vmatpush2.msra.mxu0 0.0
    %362 = vmatprep.subr.mxu0 0.0
    %363 = vmatpush2.msra.mxu0 0.0
    %364 = vmatprep.subr.mxu0 0.0
    %365 = vmatpush2.msra.mxu0 0.0
    %366 = vmatprep.subr.mxu0 0.0
    %367 = vmatpush2.msra.mxu0 0.0
    %368 = vmatprep.subr.mxu0 0.0
    %369 = vmatpush2.msra.mxu0 0.0
    %370 = vmatprep.subr.mxu0 0.0
    %371 = vmatpush2.msra.mxu0 0.0
    %372 = vmatprep.subr.mxu0 0.0
    %373 = vmatpush2.msra.mxu0 0.0
    %374 = vmatprep.subr.mxu0 0.0
    %375 = vmatpush2.msra.mxu0 0.0
    %376 = vmatprep.subr.mxu0 0.0
    %377 = vmatpush2.msra.mxu0 0.0
    %378 = vmatprep.subr.mxu0 0.0
    %379 = vmatpush2.msra.mxu0 0.0
    %380 = vmatprep.subr.mxu0 0.0
    %381 = vmatpush2.msra.mxu0 0.0
    %382 = vmatprep.subr.mxu0 0.0
    %383 = vmatpush2.msra.mxu0 0.0
    %384 = vmatprep.subr.mxu0 0.0
    %385 = vmatpush2.msra.mxu0 0.0
    %386 = vmatprep.mubr.f32.mxu0 0.0
    %387 = vmatmul.mubr.f32.gmra.mxu0 %v82
    %v388 = vpop.f32.mrf.mxu0
    %v389 = vadd.f32 0.0, %v388
    %v390 = vpop.f32.mrf.mxu0
    %v391 = vadd.f32 0.0, %v390
    %392 = vdwg.mxu0
    %v393 = vmax.f32 %v176, %v247
    %v394 = vmax.f32 %v178, %v249
    %v395 = vmax.f32 %v393, %v318
    %v396 = vmax.f32 %v394, %v320
    %v397 = vmax.f32 %v395, %v389
    %v398 = vmax.f32 %v396, %v391
    %v399 = vld [vmem:[%s3] sm:$0xff]
    %401 = vset.pattern.permute.xlu0 0
    %402 = vperm.xlu0 %401, %v399
    %v403 = vpop.permute.xlu0 %402
    %v405 = vadd.f32 %v397, %v403
    %v406 = vadd.f32 %v398, %v403
    %vm407 = vcmp.gt.f32.partialorder %v405, 0.0
    %vm408 = vcmp.gt.f32.partialorder %v406, 0.0
    %v409 = vmul.f32 %v405, 0.01
    %v410 = vmul.f32 %v406, 0.01
    %v411 = vsel %vm407, %v405, %v409
    %v412 = vsel %vm408, %v406, %v410
    %v413 = vld [vmem:[%s4] sm:$0xff]
    %v414 = vld [vmem:[%s4 + $0x8] sm:$0xff]
    %v415 = vld [vmem:[%s4 + $0x10] sm:$0xff]
    %v416 = vld [vmem:[%s4 + $0x18] sm:$0xff]
    %v417 = vld [vmem:[%s4 + $0x20] sm:$0xff]
    %v418 = vld [vmem:[%s4 + $0x28] sm:$0xff]
    %v419 = vld [vmem:[%s4 + $0x30] sm:$0xff]
    %v420 = vld [vmem:[%s4 + $0x38] sm:$0xff]
    %v421 = vld [vmem:[%s4 + $0x40] sm:$0xff]
    %v422 = vld [vmem:[%s4 + $0x48] sm:$0xff]
    %v423 = vld [vmem:[%s4 + $0x50] sm:$0xff]
    %v424 = vld [vmem:[%s4 + $0x58] sm:$0xff]
    %v425 = vld [vmem:[%s4 + $0x60] sm:$0xff]
    %v426 = vld [vmem:[%s4 + $0x68] sm:$0xff]
    %v427 = vld [vmem:[%s4 + $0x70] sm:$0xff]
    %v428 = vld [vmem:[%s4 + $0x78] sm:$0xff]
    %v429 = vld [vmem:[%s4 + $0x80] sm:$0xff]
    %v430 = vld [vmem:[%s4 + $0x88] sm:$0xff]
    %v431 = vld [vmem:[%s4 + $0x90] sm:$0xff]
    %v432 = vld [vmem:[%s4 + $0x98] sm:$0xff]
    %v433 = vld [vmem:[%s4 + $0xa0] sm:$0xff]
    %v434 = vld [vmem:[%s4 + $0xa8] sm:$0xff]
    %v435 = vld [vmem:[%s4 + $0xb0] sm:$0xff]
    %v436 = vld [vmem:[%s4 + $0xb8] sm:$0xff]
    %v437 = vld [vmem:[%s4 + $0xc0] sm:$0xff]
    %v438 = vld [vmem:[%s4 + $0xc8] sm:$0xff]
    %v439 = vld [vmem:[%s4 + $0xd0] sm:$0xff]
    %v440 = vld [vmem:[%s4 + $0xd8] sm:$0xff]
    %v441 = vld [vmem:[%s4 + $0xe0] sm:$0xff]
    %v442 = vld [vmem:[%s4 + $0xe8] sm:$0xff]
    %v443 = vld [vmem:[%s4 + $0xf0] sm:$0xff]
    %v444 = vld [vmem:[%s4 + $0xf8] sm:$0xff]
    %v445 = vld [vmem:[%s4 + $0x100] sm:$0xff]
    %v446 = vld [vmem:[%s4 + $0x108] sm:$0xff]
    %v447 = vld [vmem:[%s4 + $0x110] sm:$0xff]
    %v448 = vld [vmem:[%s4 + $0x118] sm:$0xff]
    %v449 = vld [vmem:[%s4 + $0x120] sm:$0xff]
    %v450 = vld [vmem:[%s4 + $0x128] sm:$0xff]
    %v451 = vld [vmem:[%s4 + $0x130] sm:$0xff]
    %v452 = vld [vmem:[%s4 + $0x138] sm:$0xff]
    %v453 = vld [vmem:[%s4 + $0x140] sm:$0xff]
    %v454 = vld [vmem:[%s4 + $0x148] sm:$0xff]
    %v455 = vld [vmem:[%s4 + $0x150] sm:$0xff]
    %v456 = vld [vmem:[%s4 + $0x158] sm:$0xff]
    %v457 = vld [vmem:[%s4 + $0x160] sm:$0xff]
    %v458 = vld [vmem:[%s4 + $0x168] sm:$0xff]
    %v459 = vld [vmem:[%s4 + $0x170] sm:$0xff]
    %v460 = vld [vmem:[%s4 + $0x178] sm:$0xff]
    %v461 = vld [vmem:[%s4 + $0x180] sm:$0xff]
    %v462 = vld [vmem:[%s4 + $0x188] sm:$0xff]
    %v463 = vld [vmem:[%s4 + $0x190] sm:$0xff]
    %v464 = vld [vmem:[%s4 + $0x198] sm:$0xff]
    %v465 = vld [vmem:[%s4 + $0x1a0] sm:$0xff]
    %v466 = vld [vmem:[%s4 + $0x1a8] sm:$0xff]
    %v467 = vld [vmem:[%s4 + $0x1b0] sm:$0xff]
    %v468 = vld [vmem:[%s4 + $0x1b8] sm:$0xff]
    %v469 = vld [vmem:[%s4 + $0x1c0] sm:$0xff]
    %v470 = vld [vmem:[%s4 + $0x1c8] sm:$0xff]
    %v471 = vld [vmem:[%s4 + $0x1d0] sm:$0xff]
    %v472 = vld [vmem:[%s4 + $0x1d8] sm:$0xff]
    %v473 = vld [vmem:[%s4 + $0x1e0] sm:$0xff]
    %v474 = vld [vmem:[%s4 + $0x1e8] sm:$0xff]
    %v475 = vld [vmem:[%s4 + $0x1f0] sm:$0xff]
    %v476 = vld [vmem:[%s4 + $0x1f8] sm:$0xff]
    %v477 = vld [vmem:[%s4 + $0x200] sm:$0xff]
    %v478 = vld [vmem:[%s4 + $0x208] sm:$0xff]
    %v479 = vld [vmem:[%s4 + $0x210] sm:$0xff]
    %v480 = vld [vmem:[%s4 + $0x218] sm:$0xff]
    %v481 = vld [vmem:[%s4 + $0x220] sm:$0xff]
    %v482 = vld [vmem:[%s4 + $0x228] sm:$0xff]
    %v483 = vld [vmem:[%s4 + $0x230] sm:$0xff]
    %v484 = vld [vmem:[%s4 + $0x238] sm:$0xff]
    %v485 = vld [vmem:[%s4 + $0x240] sm:$0xff]
    %v486 = vld [vmem:[%s4 + $0x248] sm:$0xff]
    %v487 = vld [vmem:[%s4 + $0x250] sm:$0xff]
    %v488 = vld [vmem:[%s4 + $0x258] sm:$0xff]
    %v489 = vld [vmem:[%s4 + $0x260] sm:$0xff]
    %v490 = vld [vmem:[%s4 + $0x268] sm:$0xff]
    %v491 = vld [vmem:[%s4 + $0x270] sm:$0xff]
    %v492 = vld [vmem:[%s4 + $0x278] sm:$0xff]
    %v493 = vld [vmem:[%s4 + $0x280] sm:$0xff]
    %v494 = vld [vmem:[%s4 + $0x288] sm:$0xff]
    %v495 = vld [vmem:[%s4 + $0x290] sm:$0xff]
    %v496 = vld [vmem:[%s4 + $0x298] sm:$0xff]
    %v497 = vld [vmem:[%s4 + $0x2a0] sm:$0xff]
    %v498 = vld [vmem:[%s4 + $0x2a8] sm:$0xff]
    %v499 = vld [vmem:[%s4 + $0x2b0] sm:$0xff]
    %v500 = vld [vmem:[%s4 + $0x2b8] sm:$0xff]
    %v501 = vld [vmem:[%s4 + $0x2c0] sm:$0xff]
    %v502 = vld [vmem:[%s4 + $0x2c8] sm:$0xff]
    %v503 = vld [vmem:[%s4 + $0x2d0] sm:$0xff]
    %v504 = vld [vmem:[%s4 + $0x2d8] sm:$0xff]
    %v505 = vld [vmem:[%s4 + $0x2e0] sm:$0xff]
    %v506 = vld [vmem:[%s4 + $0x2e8] sm:$0xff]
    %v507 = vld [vmem:[%s4 + $0x2f0] sm:$0xff]
    %v508 = vld [vmem:[%s4 + $0x2f8] sm:$0xff]
    %v509 = vld [vmem:[%s4 + $0x300] sm:$0xff]
    %v510 = vld [vmem:[%s4 + $0x308] sm:$0xff]
    %v511 = vld [vmem:[%s4 + $0x310] sm:$0xff]
    %v512 = vld [vmem:[%s4 + $0x318] sm:$0xff]
    %v513 = vld [vmem:[%s4 + $0x320] sm:$0xff]
    %v514 = vld [vmem:[%s4 + $0x328] sm:$0xff]
    %v515 = vld [vmem:[%s4 + $0x330] sm:$0xff]
    %v516 = vld [vmem:[%s4 + $0x338] sm:$0xff]
    %v517 = vld [vmem:[%s4 + $0x340] sm:$0xff]
    %v518 = vld [vmem:[%s4 + $0x348] sm:$0xff]
    %v519 = vld [vmem:[%s4 + $0x350] sm:$0xff]
    %v520 = vld [vmem:[%s4 + $0x358] sm:$0xff]
    %v521 = vld [vmem:[%s4 + $0x360] sm:$0xff]
    %v522 = vld [vmem:[%s4 + $0x368] sm:$0xff]
    %v523 = vld [vmem:[%s4 + $0x370] sm:$0xff]
    %v524 = vld [vmem:[%s4 + $0x378] sm:$0xff]
    %v525 = vld [vmem:[%s4 + $0x380] sm:$0xff]
    %v526 = vld [vmem:[%s4 + $0x388] sm:$0xff]
    %v527 = vld [vmem:[%s4 + $0x390] sm:$0xff]
    %v528 = vld [vmem:[%s4 + $0x398] sm:$0xff]
    %v529 = vld [vmem:[%s4 + $0x3a0] sm:$0xff]
    %v530 = vld [vmem:[%s4 + $0x3a8] sm:$0xff]
    %v531 = vld [vmem:[%s4 + $0x3b0] sm:$0xff]
    %v532 = vld [vmem:[%s4 + $0x3b8] sm:$0xff]
    %v533 = vld [vmem:[%s4 + $0x3c0] sm:$0xff]
    %v534 = vld [vmem:[%s4 + $0x3c8] sm:$0xff]
    %v535 = vld [vmem:[%s4 + $0x3d0] sm:$0xff]
    %v536 = vld [vmem:[%s4 + $0x3d8] sm:$0xff]
    %v537 = vld [vmem:[%s4 + $0x3e0] sm:$0xff]
    %v538 = vld [vmem:[%s4 + $0x3e8] sm:$0xff]
    %v539 = vld [vmem:[%s4 + $0x3f0] sm:$0xff]
    %v540 = vld [vmem:[%s4 + $0x3f8] sm:$0xff]
    %v542 = vcombine.high %v411, %v411
    %v544 = vunpack.c.l.s4 1966171168
    %v545 = vunpack.c.0.s8 %v544
    %v546 = vlaneseq
    %v547 = vshrl.u32 %v546, 7
    %v548 = vsub.s32 %v545, %v547
    %v549 = vrot.slane %v411, %v548
    %v551 = vunpack.c.l.s4 1966171168
    %v552 = vunpack.c.0.s8 %v551
    %v553 = vlaneseq
    %v554 = vshrl.u32 %v553, 7
    %v555 = vsub.s32 %v552, %v554
    %v556 = vrot.slane %v542, %v555
    %v557 = vcombine.high %v549, %v549
    %v558 = vcombine.high %v556, %v556
    %v560 = vunpack.c.l.s4 1966171168
    %v561 = vunpack.c.0.s8 %v560
    %v562 = vlaneseq
    %v563 = vshrl.u32 %v562, 7
    %v564 = vsub.s32 %v561, %v563
    %v565 = vrot.slane %v549, %v564
    %v567 = vunpack.c.l.s4 1966171168
    %v568 = vunpack.c.0.s8 %v567
    %v569 = vlaneseq
    %v570 = vshrl.u32 %v569, 7
    %v571 = vsub.s32 %v568, %v570
    %v572 = vrot.slane %v556, %v571
    %v574 = vunpack.c.l.s4 1966171168
    %v575 = vunpack.c.0.s8 %v574
    %v576 = vlaneseq
    %v577 = vshrl.u32 %v576, 7
    %v578 = vsub.s32 %v575, %v577
    %v579 = vrot.slane %v557, %v578
    %v581 = vunpack.c.l.s4 1966171168
    %v582 = vunpack.c.0.s8 %v581
    %v583 = vlaneseq
    %v584 = vshrl.u32 %v583, 7
    %v585 = vsub.s32 %v582, %v584
    %v586 = vrot.slane %v558, %v585
    %v587 = vcombine.high %v565, %v565
    %v588 = vcombine.high %v572, %v572
    %v589 = vcombine.high %v579, %v579
    %v590 = vcombine.high %v586, %v586
    %599 = vmatprep.subr.mxu0 0.0
    %600 = vmatpush1.msra.mxu0 %v428
    %601 = vmatprep.subr.mxu0 0.0
    %602 = vmatpush1.msra.mxu0 %v427
    %603 = vmatprep.subr.mxu0 0.0
    %604 = vmatpush1.msra.mxu0 %v426
    %605 = vmatprep.subr.mxu0 0.0
    %606 = vmatpush1.msra.mxu0 %v425
    %607 = vmatprep.subr.mxu0 0.0
    %608 = vmatpush1.msra.mxu0 %v424
    %609 = vmatprep.subr.mxu0 0.0
    %610 = vmatpush1.msra.mxu0 %v423
    %611 = vmatprep.subr.mxu0 0.0
    %612 = vmatpush1.msra.mxu0 %v422
    %613 = vmatprep.subr.mxu0 0.0
    %614 = vmatpush1.msra.mxu0 %v421
    %615 = vmatprep.subr.mxu0 0.0
    %616 = vmatpush1.msra.mxu0 %v420
    %617 = vmatprep.subr.mxu0 0.0
    %618 = vmatpush1.msra.mxu0 %v419
    %619 = vmatprep.subr.mxu0 0.0
    %620 = vmatpush1.msra.mxu0 %v418
    %621 = vmatprep.subr.mxu0 0.0
    %622 = vmatpush1.msra.mxu0 %v417
    %623 = vmatprep.subr.mxu0 0.0
    %624 = vmatpush1.msra.mxu0 %v416
    %625 = vmatprep.subr.mxu0 0.0
    %626 = vmatpush1.msra.mxu0 %v415
    %627 = vmatprep.subr.mxu0 0.0
    %628 = vmatpush1.msra.mxu0 %v414
    %629 = vmatprep.subr.mxu0 0.0
    %630 = vmatpush1.msra.mxu0 %v413
    %631 = vmatprep.subr.mxu0 0.0
    %632 = vmatpush2.msra.mxu0 0.0
    %633 = vmatprep.subr.mxu0 0.0
    %634 = vmatpush2.msra.mxu0 0.0
    %635 = vmatprep.subr.mxu0 0.0
    %636 = vmatpush2.msra.mxu0 0.0
    %637 = vmatprep.subr.mxu0 0.0
    %638 = vmatpush2.msra.mxu0 0.0
    %639 = vmatprep.subr.mxu0 0.0
    %640 = vmatpush2.msra.mxu0 0.0
    %641 = vmatprep.subr.mxu0 0.0
    %642 = vmatpush2.msra.mxu0 0.0
    %643 = vmatprep.subr.mxu0 0.0
    %644 = vmatpush2.msra.mxu0 0.0
    %645 = vmatprep.subr.mxu0 0.0
    %646 = vmatpush2.msra.mxu0 0.0
    %647 = vmatprep.subr.mxu0 0.0
    %648 = vmatpush2.msra.mxu0 0.0
    %649 = vmatprep.subr.mxu0 0.0
    %650 = vmatpush2.msra.mxu0 0.0
    %651 = vmatprep.subr.mxu0 0.0
    %652 = vmatpush2.msra.mxu0 0.0
    %653 = vmatprep.subr.mxu0 0.0
    %654 = vmatpush2.msra.mxu0 0.0
    %655 = vmatprep.subr.mxu0 0.0
    %656 = vmatpush2.msra.mxu0 0.0
    %657 = vmatprep.subr.mxu0 0.0
    %658 = vmatpush2.msra.mxu0 0.0
    %659 = vmatprep.subr.mxu0 0.0
    %660 = vmatpush2.msra.mxu0 0.0
    %661 = vmatprep.subr.mxu0 0.0
    %662 = vmatpush2.msra.mxu0 0.0
    %663 = vmatprep.mubr.f32.mxu0 0.0
    %664 = vmatmul.mubr.f32.gmra.mxu0 %v565
    %v665 = vpop.f32.mrf.mxu0
    %v666 = vadd.f32 0.0, %v665
    %v667 = vpop.f32.mrf.mxu0
    %668 = vdwg.mxu0
    %669 = vmatprep.subr.mxu0 0.0
    %670 = vmatpush1.msra.mxu0 %v444
    %671 = vmatprep.subr.mxu0 0.0
    %672 = vmatpush1.msra.mxu0 %v443
    %673 = vmatprep.subr.mxu0 0.0
    %674 = vmatpush1.msra.mxu0 %v442
    %675 = vmatprep.subr.mxu0 0.0
    %676 = vmatpush1.msra.mxu0 %v441
    %677 = vmatprep.subr.mxu0 0.0
    %678 = vmatpush1.msra.mxu0 %v440
    %679 = vmatprep.subr.mxu0 0.0
    %680 = vmatpush1.msra.mxu0 %v439
    %681 = vmatprep.subr.mxu0 0.0
    %682 = vmatpush1.msra.mxu0 %v438
    %683 = vmatprep.subr.mxu0 0.0
    %684 = vmatpush1.msra.mxu0 %v437
    %685 = vmatprep.subr.mxu0 0.0
    %686 = vmatpush1.msra.mxu0 %v436
    %687 = vmatprep.subr.mxu0 0.0
    %688 = vmatpush1.msra.mxu0 %v435
    %689 = vmatprep.subr.mxu0 0.0
    %690 = vmatpush1.msra.mxu0 %v434
    %691 = vmatprep.subr.mxu0 0.0
    %692 = vmatpush1.msra.mxu0 %v433
    %693 = vmatprep.subr.mxu0 0.0
    %694 = vmatpush1.msra.mxu0 %v432
    %695 = vmatprep.subr.mxu0 0.0
    %696 = vmatpush1.msra.mxu0 %v431
    %697 = vmatprep.subr.mxu0 0.0
    %698 = vmatpush1.msra.mxu0 %v430
    %699 = vmatprep.subr.mxu0 0.0
    %700 = vmatpush1.msra.mxu0 %v429
    %701 = vmatprep.subr.mxu0 0.0
    %702 = vmatpush2.msra.mxu0 0.0
    %703 = vmatprep.subr.mxu0 0.0
    %704 = vmatpush2.msra.mxu0 0.0
    %705 = vmatprep.subr.mxu0 0.0
    %706 = vmatpush2.msra.mxu0 0.0
    %707 = vmatprep.subr.mxu0 0.0
    %708 = vmatpush2.msra.mxu0 0.0
    %709 = vmatprep.subr.mxu0 0.0
    %710 = vmatpush2.msra.mxu0 0.0
    %711 = vmatprep.subr.mxu0 0.0
    %712 = vmatpush2.msra.mxu0 0.0
    %713 = vmatprep.subr.mxu0 0.0
    %714 = vmatpush2.msra.mxu0 0.0
    %715 = vmatprep.subr.mxu0 0.0
    %716 = vmatpush2.msra.mxu0 0.0
    %717 = vmatprep.subr.mxu0 0.0
    %718 = vmatpush2.msra.mxu0 0.0
    %719 = vmatprep.subr.mxu0 0.0
    %720 = vmatpush2.msra.mxu0 0.0
    %721 = vmatprep.subr.mxu0 0.0
    %722 = vmatpush2.msra.mxu0 0.0
    %723 = vmatprep.subr.mxu0 0.0
    %724 = vmatpush2.msra.mxu0 0.0
    %725 = vmatprep.subr.mxu0 0.0
    %726 = vmatpush2.msra.mxu0 0.0
    %727 = vmatprep.subr.mxu0 0.0
    %728 = vmatpush2.msra.mxu0 0.0
    %729 = vmatprep.subr.mxu0 0.0
    %730 = vmatpush2.msra.mxu0 0.0
    %731 = vmatprep.subr.mxu0 0.0
    %732 = vmatpush2.msra.mxu0 0.0
    %733 = vmatprep.mubr.f32.mxu0 0.0
    %734 = vmatmul.mubr.f32.gmra.mxu0 %v579
    %v735 = vpop.f32.mrf.mxu0
    %v736 = vadd.f32 0.0, %v735
    %v737 = vpop.f32.mrf.mxu0
    %738 = vdwg.mxu0
    %739 = vmatprep.subr.mxu0 0.0
    %740 = vmatpush1.msra.mxu0 %v460
    %741 = vmatprep.subr.mxu0 0.0
    %742 = vmatpush1.msra.mxu0 %v459
    %743 = vmatprep.subr.mxu0 0.0
    %744 = vmatpush1.msra.mxu0 %v458
    %745 = vmatprep.subr.mxu0 0.0
    %746 = vmatpush1.msra.mxu0 %v457
    %747 = vmatprep.subr.mxu0 0.0
    %748 = vmatpush1.msra.mxu0 %v456
    %749 = vmatprep.subr.mxu0 0.0
    %750 = vmatpush1.msra.mxu0 %v455
    %751 = vmatprep.subr.mxu0 0.0
    %752 = vmatpush1.msra.mxu0 %v454
    %753 = vmatprep.subr.mxu0 0.0
    %754 = vmatpush1.msra.mxu0 %v453
    %755 = vmatprep.subr.mxu0 0.0
    %756 = vmatpush1.msra.mxu0 %v452
    %757 = vmatprep.subr.mxu0 0.0
    %758 = vmatpush1.msra.mxu0 %v451
    %759 = vmatprep.subr.mxu0 0.0
    %760 = vmatpush1.msra.mxu0 %v450
    %761 = vmatprep.subr.mxu0 0.0
    %762 = vmatpush1.msra.mxu0 %v449
    %763 = vmatprep.subr.mxu0 0.0
    %764 = vmatpush1.msra.mxu0 %v448
    %765 = vmatprep.subr.mxu0 0.0
    %766 = vmatpush1.msra.mxu0 %v447
    %767 = vmatprep.subr.mxu0 0.0
    %768 = vmatpush1.msra.mxu0 %v446
    %769 = vmatprep.subr.mxu0 0.0
    %770 = vmatpush1.msra.mxu0 %v445
    %771 = vmatprep.subr.mxu0 0.0
    %772 = vmatpush2.msra.mxu0 0.0
    %773 = vmatprep.subr.mxu0 0.0
    %774 = vmatpush2.msra.mxu0 0.0
    %775 = vmatprep.subr.mxu0 0.0
    %776 = vmatpush2.msra.mxu0 0.0
    %777 = vmatprep.subr.mxu0 0.0
    %778 = vmatpush2.msra.mxu0 0.0
    %779 = vmatprep.subr.mxu0 0.0
    %780 = vmatpush2.msra.mxu0 0.0
    %781 = vmatprep.subr.mxu0 0.0
    %782 = vmatpush2.msra.mxu0 0.0
    %783 = vmatprep.subr.mxu0 0.0
    %784 = vmatpush2.msra.mxu0 0.0
    %785 = vmatprep.subr.mxu0 0.0
    %786 = vmatpush2.msra.mxu0 0.0
    %787 = vmatprep.subr.mxu0 0.0
    %788 = vmatpush2.msra.mxu0 0.0
    %789 = vmatprep.subr.mxu0 0.0
    %790 = vmatpush2.msra.mxu0 0.0
    %791 = vmatprep.subr.mxu0 0.0
    %792 = vmatpush2.msra.mxu0 0.0
    %793 = vmatprep.subr.mxu0 0.0
    %794 = vmatpush2.msra.mxu0 0.0
    %795 = vmatprep.subr.mxu0 0.0
    %796 = vmatpush2.msra.mxu0 0.0
    %797 = vmatprep.subr.mxu0 0.0
    %798 = vmatpush2.msra.mxu0 0.0
    %799 = vmatprep.subr.mxu0 0.0
    %800 = vmatpush2.msra.mxu0 0.0
    %801 = vmatprep.subr.mxu0 0.0
    %802 = vmatpush2.msra.mxu0 0.0
    %803 = vmatprep.mubr.f32.mxu0 0.0
    %804 = vmatmul.mubr.f32.gmra.mxu0 %v587
    %v805 = vpop.f32.mrf.mxu0
    %v806 = vadd.f32 0.0, %v805
    %v807 = vpop.f32.mrf.mxu0
    %808 = vdwg.mxu0
    %809 = vmatprep.subr.mxu0 0.0
    %810 = vmatpush1.msra.mxu0 %v476
    %811 = vmatprep.subr.mxu0 0.0
    %812 = vmatpush1.msra.mxu0 %v475
    %813 = vmatprep.subr.mxu0 0.0
    %814 = vmatpush1.msra.mxu0 %v474
    %815 = vmatprep.subr.mxu0 0.0
    %816 = vmatpush1.msra.mxu0 %v473
    %817 = vmatprep.subr.mxu0 0.0
    %818 = vmatpush1.msra.mxu0 %v472
    %819 = vmatprep.subr.mxu0 0.0
    %820 = vmatpush1.msra.mxu0 %v471
    %821 = vmatprep.subr.mxu0 0.0
    %822 = vmatpush1.msra.mxu0 %v470
    %823 = vmatprep.subr.mxu0 0.0
    %824 = vmatpush1.msra.mxu0 %v469
    %825 = vmatprep.subr.mxu0 0.0
    %826 = vmatpush1.msra.mxu0 %v468
    %827 = vmatprep.subr.mxu0 0.0
    %828 = vmatpush1.msra.mxu0 %v467
    %829 = vmatprep.subr.mxu0 0.0
    %830 = vmatpush1.msra.mxu0 %v466
    %831 = vmatprep.subr.mxu0 0.0
    %832 = vmatpush1.msra.mxu0 %v465
    %833 = vmatprep.subr.mxu0 0.0
    %834 = vmatpush1.msra.mxu0 %v464
    %835 = vmatprep.subr.mxu0 0.0
    %836 = vmatpush1.msra.mxu0 %v463
    %837 = vmatprep.subr.mxu0 0.0
    %838 = vmatpush1.msra.mxu0 %v462
    %839 = vmatprep.subr.mxu0 0.0
    %840 = vmatpush1.msra.mxu0 %v461
    %841 = vmatprep.subr.mxu0 0.0
    %842 = vmatpush2.msra.mxu0 0.0
    %843 = vmatprep.subr.mxu0 0.0
    %844 = vmatpush2.msra.mxu0 0.0
    %845 = vmatprep.subr.mxu0 0.0
    %846 = vmatpush2.msra.mxu0 0.0
    %847 = vmatprep.subr.mxu0 0.0
    %848 = vmatpush2.msra.mxu0 0.0
    %849 = vmatprep.subr.mxu0 0.0
    %850 = vmatpush2.msra.mxu0 0.0
    %851 = vmatprep.subr.mxu0 0.0
    %852 = vmatpush2.msra.mxu0 0.0
    %853 = vmatprep.subr.mxu0 0.0
    %854 = vmatpush2.msra.mxu0 0.0
    %855 = vmatprep.subr.mxu0 0.0
    %856 = vmatpush2.msra.mxu0 0.0
    %857 = vmatprep.subr.mxu0 0.0
    %858 = vmatpush2.msra.mxu0 0.0
    %859 = vmatprep.subr.mxu0 0.0
    %860 = vmatpush2.msra.mxu0 0.0
    %861 = vmatprep.subr.mxu0 0.0
    %862 = vmatpush2.msra.mxu0 0.0
    %863 = vmatprep.subr.mxu0 0.0
    %864 = vmatpush2.msra.mxu0 0.0
    %865 = vmatprep.subr.mxu0 0.0
    %866 = vmatpush2.msra.mxu0 0.0
    %867 = vmatprep.subr.mxu0 0.0
    %868 = vmatpush2.msra.mxu0 0.0
    %869 = vmatprep.subr.mxu0 0.0
    %870 = vmatpush2.msra.mxu0 0.0
    %871 = vmatprep.subr.mxu0 0.0
    %872 = vmatpush2.msra.mxu0 0.0
    %873 = vmatprep.mubr.f32.mxu0 0.0
    %874 = vmatmul.mubr.f32.gmra.mxu0 %v589
    %v875 = vpop.f32.mrf.mxu0
    %v876 = vadd.f32 0.0, %v875
    %v877 = vpop.f32.mrf.mxu0
    %878 = vdwg.mxu0
    %879 = vmatprep.subr.mxu0 0.0
    %880 = vmatpush1.msra.mxu0 %v492
    %881 = vmatprep.subr.mxu0 0.0
    %882 = vmatpush1.msra.mxu0 %v491
    %883 = vmatprep.subr.mxu0 0.0
    %884 = vmatpush1.msra.mxu0 %v490
    %885 = vmatprep.subr.mxu0 0.0
    %886 = vmatpush1.msra.mxu0 %v489
    %887 = vmatprep.subr.mxu0 0.0
    %888 = vmatpush1.msra.mxu0 %v488
    %889 = vmatprep.subr.mxu0 0.0
    %890 = vmatpush1.msra.mxu0 %v487
    %891 = vmatprep.subr.mxu0 0.0
    %892 = vmatpush1.msra.mxu0 %v486
    %893 = vmatprep.subr.mxu0 0.0
    %894 = vmatpush1.msra.mxu0 %v485
    %895 = vmatprep.subr.mxu0 0.0
    %896 = vmatpush1.msra.mxu0 %v484
    %897 = vmatprep.subr.mxu0 0.0
    %898 = vmatpush1.msra.mxu0 %v483
    %899 = vmatprep.subr.mxu0 0.0
    %900 = vmatpush1.msra.mxu0 %v482
    %901 = vmatprep.subr.mxu0 0.0
    %902 = vmatpush1.msra.mxu0 %v481
    %903 = vmatprep.subr.mxu0 0.0
    %904 = vmatpush1.msra.mxu0 %v480
    %905 = vmatprep.subr.mxu0 0.0
    %906 = vmatpush1.msra.mxu0 %v479
    %907 = vmatprep.subr.mxu0 0.0
    %908 = vmatpush1.msra.mxu0 %v478
    %909 = vmatprep.subr.mxu0 0.0
    %910 = vmatpush1.msra.mxu0 %v477
    %911 = vmatprep.subr.mxu0 0.0
    %912 = vmatpush2.msra.mxu0 0.0
    %913 = vmatprep.subr.mxu0 0.0
    %914 = vmatpush2.msra.mxu0 0.0
    %915 = vmatprep.subr.mxu0 0.0
    %916 = vmatpush2.msra.mxu0 0.0
    %917 = vmatprep.subr.mxu0 0.0
    %918 = vmatpush2.msra.mxu0 0.0
    %919 = vmatprep.subr.mxu0 0.0
    %920 = vmatpush2.msra.mxu0 0.0
    %921 = vmatprep.subr.mxu0 0.0
    %922 = vmatpush2.msra.mxu0 0.0
    %923 = vmatprep.subr.mxu0 0.0
    %924 = vmatpush2.msra.mxu0 0.0
    %925 = vmatprep.subr.mxu0 0.0
    %926 = vmatpush2.msra.mxu0 0.0
    %927 = vmatprep.subr.mxu0 0.0
    %928 = vmatpush2.msra.mxu0 0.0
    %929 = vmatprep.subr.mxu0 0.0
    %930 = vmatpush2.msra.mxu0 0.0
    %931 = vmatprep.subr.mxu0 0.0
    %932 = vmatpush2.msra.mxu0 0.0
    %933 = vmatprep.subr.mxu0 0.0
    %934 = vmatpush2.msra.mxu0 0.0
    %935 = vmatprep.subr.mxu0 0.0
    %936 = vmatpush2.msra.mxu0 0.0
    %937 = vmatprep.subr.mxu0 0.0
    %938 = vmatpush2.msra.mxu0 0.0
    %939 = vmatprep.subr.mxu0 0.0
    %940 = vmatpush2.msra.mxu0 0.0
    %941 = vmatprep.subr.mxu0 0.0
    %942 = vmatpush2.msra.mxu0 0.0
    %943 = vmatprep.mubr.f32.mxu0 0.0
    %944 = vmatmul.mubr.f32.gmra.mxu0 %v572
    %v945 = vpop.f32.mrf.mxu0
    %v946 = vadd.f32 0.0, %v945
    %v947 = vpop.f32.mrf.mxu0
    %948 = vdwg.mxu0
    %949 = vmatprep.subr.mxu0 0.0
    %950 = vmatpush1.msra.mxu0 %v508
    %951 = vmatprep.subr.mxu0 0.0
    %952 = vmatpush1.msra.mxu0 %v507
    %953 = vmatprep.subr.mxu0 0.0
    %954 = vmatpush1.msra.mxu0 %v506
    %955 = vmatprep.subr.mxu0 0.0
    %956 = vmatpush1.msra.mxu0 %v505
    %957 = vmatprep.subr.mxu0 0.0
    %958 = vmatpush1.msra.mxu0 %v504
    %959 = vmatprep.subr.mxu0 0.0
    %960 = vmatpush1.msra.mxu0 %v503
    %961 = vmatprep.subr.mxu0 0.0
    %962 = vmatpush1.msra.mxu0 %v502
    %963 = vmatprep.subr.mxu0 0.0
    %964 = vmatpush1.msra.mxu0 %v501
    %965 = vmatprep.subr.mxu0 0.0
    %966 = vmatpush1.msra.mxu0 %v500
    %967 = vmatprep.subr.mxu0 0.0
    %968 = vmatpush1.msra.mxu0 %v499
    %969 = vmatprep.subr.mxu0 0.0
    %970 = vmatpush1.msra.mxu0 %v498
    %971 = vmatprep.subr.mxu0 0.0
    %972 = vmatpush1.msra.mxu0 %v497
    %973 = vmatprep.subr.mxu0 0.0
    %974 = vmatpush1.msra.mxu0 %v496
    %975 = vmatprep.subr.mxu0 0.0
    %976 = vmatpush1.msra.mxu0 %v495
    %977 = vmatprep.subr.mxu0 0.0
    %978 = vmatpush1.msra.mxu0 %v494
    %979 = vmatprep.subr.mxu0 0.0
    %980 = vmatpush1.msra.mxu0 %v493
    %981 = vmatprep.subr.mxu0 0.0
    %982 = vmatpush2.msra.mxu0 0.0
    %983 = vmatprep.subr.mxu0 0.0
    %984 = vmatpush2.msra.mxu0 0.0
    %985 = vmatprep.subr.mxu0 0.0
    %986 = vmatpush2.msra.mxu0 0.0
    %987 = vmatprep.subr.mxu0 0.0
    %988 = vmatpush2.msra.mxu0 0.0
    %989 = vmatprep.subr.mxu0 0.0
    %990 = vmatpush2.msra.mxu0 0.0
    %991 = vmatprep.subr.mxu0 0.0
    %992 = vmatpush2.msra.mxu0 0.0
    %993 = vmatprep.subr.mxu0 0.0
    %994 = vmatpush2.msra.mxu0 0.0
    %995 = vmatprep.subr.mxu0 0.0
    %996 = vmatpush2.msra.mxu0 0.0
    %997 = vmatprep.subr.mxu0 0.0
    %998 = vmatpush2.msra.mxu0 0.0
    %999 = vmatprep.subr.mxu0 0.0
    %1000 = vmatpush2.msra.mxu0 0.0
    %1001 = vmatprep.subr.mxu0 0.0
    %1002 = vmatpush2.msra.mxu0 0.0
    %1003 = vmatprep.subr.mxu0 0.0
    %1004 = vmatpush2.msra.mxu0 0.0
    %1005 = vmatprep.subr.mxu0 0.0
    %1006 = vmatpush2.msra.mxu0 0.0
    %1007 = vmatprep.subr.mxu0 0.0
    %1008 = vmatpush2.msra.mxu0 0.0
    %1009 = vmatprep.subr.mxu0 0.0
    %1010 = vmatpush2.msra.mxu0 0.0
    %1011 = vmatprep.subr.mxu0 0.0
    %1012 = vmatpush2.msra.mxu0 0.0
    %1013 = vmatprep.mubr.f32.mxu0 0.0
    %1014 = vmatmul.mubr.f32.gmra.mxu0 %v586
    %v1015 = vpop.f32.mrf.mxu0
    %v1016 = vadd.f32 0.0, %v1015
    %v1017 = vpop.f32.mrf.mxu0
    %1018 = vdwg.mxu0
    %1019 = vmatprep.subr.mxu0 0.0
    %1020 = vmatpush1.msra.mxu0 %v524
    %1021 = vmatprep.subr.mxu0 0.0
    %1022 = vmatpush1.msra.mxu0 %v523
    %1023 = vmatprep.subr.mxu0 0.0
    %1024 = vmatpush1.msra.mxu0 %v522
    %1025 = vmatprep.subr.mxu0 0.0
    %1026 = vmatpush1.msra.mxu0 %v521
    %1027 = vmatprep.subr.mxu0 0.0
    %1028 = vmatpush1.msra.mxu0 %v520
    %1029 = vmatprep.subr.mxu0 0.0
    %1030 = vmatpush1.msra.mxu0 %v519
    %1031 = vmatprep.subr.mxu0 0.0
    %1032 = vmatpush1.msra.mxu0 %v518
    %1033 = vmatprep.subr.mxu0 0.0
    %1034 = vmatpush1.msra.mxu0 %v517
    %1035 = vmatprep.subr.mxu0 0.0
    %1036 = vmatpush1.msra.mxu0 %v516
    %1037 = vmatprep.subr.mxu0 0.0
    %1038 = vmatpush1.msra.mxu0 %v515
    %1039 = vmatprep.subr.mxu0 0.0
    %1040 = vmatpush1.msra.mxu0 %v514
    %1041 = vmatprep.subr.mxu0 0.0
    %1042 = vmatpush1.msra.mxu0 %v513
    %1043 = vmatprep.subr.mxu0 0.0
    %1044 = vmatpush1.msra.mxu0 %v512
    %1045 = vmatprep.subr.mxu0 0.0
    %1046 = vmatpush1.msra.mxu0 %v511
    %1047 = vmatprep.subr.mxu0 0.0
    %1048 = vmatpush1.msra.mxu0 %v510
    %1049 = vmatprep.subr.mxu0 0.0
    %1050 = vmatpush1.msra.mxu0 %v509
    %1051 = vmatprep.subr.mxu0 0.0
    %1052 = vmatpush2.msra.mxu0 0.0
    %1053 = vmatprep.subr.mxu0 0.0
    %1054 = vmatpush2.msra.mxu0 0.0
    %1055 = vmatprep.subr.mxu0 0.0
    %1056 = vmatpush2.msra.mxu0 0.0
    %1057 = vmatprep.subr.mxu0 0.0
    %1058 = vmatpush2.msra.mxu0 0.0
    %1059 = vmatprep.subr.mxu0 0.0
    %1060 = vmatpush2.msra.mxu0 0.0
    %1061 = vmatprep.subr.mxu0 0.0
    %1062 = vmatpush2.msra.mxu0 0.0
    %1063 = vmatprep.subr.mxu0 0.0
    %1064 = vmatpush2.msra.mxu0 0.0
    %1065 = vmatprep.subr.mxu0 0.0
    %1066 = vmatpush2.msra.mxu0 0.0
    %1067 = vmatprep.subr.mxu0 0.0
    %1068 = vmatpush2.msra.mxu0 0.0
    %1069 = vmatprep.subr.mxu0 0.0
    %1070 = vmatpush2.msra.mxu0 0.0
    %1071 = vmatprep.subr.mxu0 0.0
    %1072 = vmatpush2.msra.mxu0 0.0
    %1073 = vmatprep.subr.mxu0 0.0
    %1074 = vmatpush2.msra.mxu0 0.0
    %1075 = vmatprep.subr.mxu0 0.0
    %1076 = vmatpush2.msra.mxu0 0.0
    %1077 = vmatprep.subr.mxu0 0.0
    %1078 = vmatpush2.msra.mxu0 0.0
    %1079 = vmatprep.subr.mxu0 0.0
    %1080 = vmatpush2.msra.mxu0 0.0
    %1081 = vmatprep.subr.mxu0 0.0
    %1082 = vmatpush2.msra.mxu0 0.0
    %1083 = vmatprep.mubr.f32.mxu0 0.0
    %1084 = vmatmul.mubr.f32.gmra.mxu0 %v588
    %v1085 = vpop.f32.mrf.mxu0
    %v1086 = vadd.f32 0.0, %v1085
    %v1087 = vpop.f32.mrf.mxu0
    %1088 = vdwg.mxu0
    %1089 = vmatprep.subr.mxu0 0.0
    %1090 = vmatpush1.msra.mxu0 %v540
    %1091 = vmatprep.subr.mxu0 0.0
    %1092 = vmatpush1.msra.mxu0 %v539
    %1093 = vmatprep.subr.mxu0 0.0
    %1094 = vmatpush1.msra.mxu0 %v538
    %1095 = vmatprep.subr.mxu0 0.0
    %1096 = vmatpush1.msra.mxu0 %v537
    %1097 = vmatprep.subr.mxu0 0.0
    %1098 = vmatpush1.msra.mxu0 %v536
    %1099 = vmatprep.subr.mxu0 0.0
    %1100 = vmatpush1.msra.mxu0 %v535
    %1101 = vmatprep.subr.mxu0 0.0
    %1102 = vmatpush1.msra.mxu0 %v534
    %1103 = vmatprep.subr.mxu0 0.0
    %1104 = vmatpush1.msra.mxu0 %v533
    %1105 = vmatprep.subr.mxu0 0.0
    %1106 = vmatpush1.msra.mxu0 %v532
    %1107 = vmatprep.subr.mxu0 0.0
    %1108 = vmatpush1.msra.mxu0 %v531
    %1109 = vmatprep.subr.mxu0 0.0
    %1110 = vmatpush1.msra.mxu0 %v530
    %1111 = vmatprep.subr.mxu0 0.0
    %1112 = vmatpush1.msra.mxu0 %v529
    %1113 = vmatprep.subr.mxu0 0.0
    %1114 = vmatpush1.msra.mxu0 %v528
    %1115 = vmatprep.subr.mxu0 0.0
    %1116 = vmatpush1.msra.mxu0 %v527
    %1117 = vmatprep.subr.mxu0 0.0
    %1118 = vmatpush1.msra.mxu0 %v526
    %1119 = vmatprep.subr.mxu0 0.0
    %1120 = vmatpush1.msra.mxu0 %v525
    %1121 = vmatprep.subr.mxu0 0.0
    %1122 = vmatpush2.msra.mxu0 0.0
    %1123 = vmatprep.subr.mxu0 0.0
    %1124 = vmatpush2.msra.mxu0 0.0
    %1125 = vmatprep.subr.mxu0 0.0
    %1126 = vmatpush2.msra.mxu0 0.0
    %1127 = vmatprep.subr.mxu0 0.0
    %1128 = vmatpush2.msra.mxu0 0.0
    %1129 = vmatprep.subr.mxu0 0.0
    %1130 = vmatpush2.msra.mxu0 0.0
    %1131 = vmatprep.subr.mxu0 0.0
    %1132 = vmatpush2.msra.mxu0 0.0
    %1133 = vmatprep.subr.mxu0 0.0
    %1134 = vmatpush2.msra.mxu0 0.0
    %1135 = vmatprep.subr.mxu0 0.0
    %1136 = vmatpush2.msra.mxu0 0.0
    %1137 = vmatprep.subr.mxu0 0.0
    %1138 = vmatpush2.msra.mxu0 0.0
    %1139 = vmatprep.subr.mxu0 0.0
    %1140 = vmatpush2.msra.mxu0 0.0
    %1141 = vmatprep.subr.mxu0 0.0
    %1142 = vmatpush2.msra.mxu0 0.0
    %1143 = vmatprep.subr.mxu0 0.0
    %1144 = vmatpush2.msra.mxu0 0.0
    %1145 = vmatprep.subr.mxu0 0.0
    %1146 = vmatpush2.msra.mxu0 0.0
    %1147 = vmatprep.subr.mxu0 0.0
    %1148 = vmatpush2.msra.mxu0 0.0
    %1149 = vmatprep.subr.mxu0 0.0
    %1150 = vmatpush2.msra.mxu0 0.0
    %1151 = vmatprep.subr.mxu0 0.0
    %1152 = vmatpush2.msra.mxu0 0.0
    %1153 = vmatprep.mubr.f32.mxu0 0.0
    %1154 = vmatmul.mubr.f32.gmra.mxu0 %v590
    %v1155 = vpop.f32.mrf.mxu0
    %v1156 = vadd.f32 0.0, %v1155
    %v1157 = vpop.f32.mrf.mxu0
    %1158 = vdwg.mxu0
    %vm1159 = vcmask 1040384
    %v1160 = vsel %vm1159, %v666, 0.0
    %v1161 = vsel %vm1159, %v736, 0.0
    %v1162 = vadd.f32 %v1160, %v1161
    %v1163 = vsel %vm1159, %v806, 0.0
    %v1164 = vadd.f32 %v1162, %v1163
    %v1165 = vsel %vm1159, %v876, 0.0
    %v1166 = vadd.f32 %v1164, %v1165
    %v1167 = vsel %vm1159, %v946, 0.0
    %v1168 = vadd.f32 %v1166, %v1167
    %v1169 = vsel %vm1159, %v1016, 0.0
    %v1170 = vadd.f32 %v1168, %v1169
    %v1171 = vsel %vm1159, %v1086, 0.0
    %v1172 = vadd.f32 %v1170, %v1171
    %v1173 = vsel %vm1159, %v1156, 0.0
    %v1174 = vadd.f32 %v1172, %v1173
    %v1176 = vcombine.high %v412, %v412
    %v1178 = vunpack.c.l.s4 1966171168
    %v1179 = vunpack.c.0.s8 %v1178
    %v1180 = vlaneseq
    %v1181 = vshrl.u32 %v1180, 7
    %v1182 = vsub.s32 %v1179, %v1181
    %v1183 = vrot.slane %v412, %v1182
    %v1185 = vunpack.c.l.s4 1966171168
    %v1186 = vunpack.c.0.s8 %v1185
    %v1187 = vlaneseq
    %v1188 = vshrl.u32 %v1187, 7
    %v1189 = vsub.s32 %v1186, %v1188
    %v1190 = vrot.slane %v1176, %v1189
    %v1191 = vcombine.high %v1183, %v1183
    %v1192 = vcombine.high %v1190, %v1190
    %v1194 = vunpack.c.l.s4 1966171168
    %v1195 = vunpack.c.0.s8 %v1194
    %v1196 = vlaneseq
    %v1197 = vshrl.u32 %v1196, 7
    %v1198 = vsub.s32 %v1195, %v1197
    %v1199 = vrot.slane %v1183, %v1198
    %v1201 = vunpack.c.l.s4 1966171168
    %v1202 = vunpack.c.0.s8 %v1201
    %v1203 = vlaneseq
    %v1204 = vshrl.u32 %v1203, 7
    %v1205 = vsub.s32 %v1202, %v1204
    %v1206 = vrot.slane %v1190, %v1205
    %v1208 = vunpack.c.l.s4 1966171168
    %v1209 = vunpack.c.0.s8 %v1208
    %v1210 = vlaneseq
    %v1211 = vshrl.u32 %v1210, 7
    %v1212 = vsub.s32 %v1209, %v1211
    %v1213 = vrot.slane %v1191, %v1212
    %v1215 = vunpack.c.l.s4 1966171168
    %v1216 = vunpack.c.0.s8 %v1215
    %v1217 = vlaneseq
    %v1218 = vshrl.u32 %v1217, 7
    %v1219 = vsub.s32 %v1216, %v1218
    %v1220 = vrot.slane %v1192, %v1219
    %v1221 = vcombine.high %v1199, %v1199
    %v1222 = vcombine.high %v1206, %v1206
    %v1223 = vcombine.high %v1213, %v1213
    %v1224 = vcombine.high %v1220, %v1220
    %1233 = vmatprep.subr.mxu0 0.0
    %1234 = vmatpush1.msra.mxu0 %v428
    %1235 = vmatprep.subr.mxu0 0.0
    %1236 = vmatpush1.msra.mxu0 %v427
    %1237 = vmatprep.subr.mxu0 0.0
    %1238 = vmatpush1.msra.mxu0 %v426
    %1239 = vmatprep.subr.mxu0 0.0
    %1240 = vmatpush1.msra.mxu0 %v425
    %1241 = vmatprep.subr.mxu0 0.0
    %1242 = vmatpush1.msra.mxu0 %v424
    %1243 = vmatprep.subr.mxu0 0.0
    %1244 = vmatpush1.msra.mxu0 %v423
    %1245 = vmatprep.subr.mxu0 0.0
    %1246 = vmatpush1.msra.mxu0 %v422
    %1247 = vmatprep.subr.mxu0 0.0
    %1248 = vmatpush1.msra.mxu0 %v421
    %1249 = vmatprep.subr.mxu0 0.0
    %1250 = vmatpush1.msra.mxu0 %v420
    %1251 = vmatprep.subr.mxu0 0.0
    %1252 = vmatpush1.msra.mxu0 %v419
    %1253 = vmatprep.subr.mxu0 0.0
    %1254 = vmatpush1.msra.mxu0 %v418
    %1255 = vmatprep.subr.mxu0 0.0
    %1256 = vmatpush1.msra.mxu0 %v417
    %1257 = vmatprep.subr.mxu0 0.0
    %1258 = vmatpush1.msra.mxu0 %v416
    %1259 = vmatprep.subr.mxu0 0.0
    %1260 = vmatpush1.msra.mxu0 %v415
    %1261 = vmatprep.subr.mxu0 0.0
    %1262 = vmatpush1.msra.mxu0 %v414
    %1263 = vmatprep.subr.mxu0 0.0
    %1264 = vmatpush1.msra.mxu0 %v413
    %1265 = vmatprep.subr.mxu0 0.0
    %1266 = vmatpush2.msra.mxu0 0.0
    %1267 = vmatprep.subr.mxu0 0.0
    %1268 = vmatpush2.msra.mxu0 0.0
    %1269 = vmatprep.subr.mxu0 0.0
    %1270 = vmatpush2.msra.mxu0 0.0
    %1271 = vmatprep.subr.mxu0 0.0
    %1272 = vmatpush2.msra.mxu0 0.0
    %1273 = vmatprep.subr.mxu0 0.0
    %1274 = vmatpush2.msra.mxu0 0.0
    %1275 = vmatprep.subr.mxu0 0.0
    %1276 = vmatpush2.msra.mxu0 0.0
    %1277 = vmatprep.subr.mxu0 0.0
    %1278 = vmatpush2.msra.mxu0 0.0
    %1279 = vmatprep.subr.mxu0 0.0
    %1280 = vmatpush2.msra.mxu0 0.0
    %1281 = vmatprep.subr.mxu0 0.0
    %1282 = vmatpush2.msra.mxu0 0.0
    %1283 = vmatprep.subr.mxu0 0.0
    %1284 = vmatpush2.msra.mxu0 0.0
    %1285 = vmatprep.subr.mxu0 0.0
    %1286 = vmatpush2.msra.mxu0 0.0
    %1287 = vmatprep.subr.mxu0 0.0
    %1288 = vmatpush2.msra.mxu0 0.0
    %1289 = vmatprep.subr.mxu0 0.0
    %1290 = vmatpush2.msra.mxu0 0.0
    %1291 = vmatprep.subr.mxu0 0.0
    %1292 = vmatpush2.msra.mxu0 0.0
    %1293 = vmatprep.subr.mxu0 0.0
    %1294 = vmatpush2.msra.mxu0 0.0
    %1295 = vmatprep.subr.mxu0 0.0
    %1296 = vmatpush2.msra.mxu0 0.0
    %1297 = vmatprep.mubr.f32.mxu0 0.0
    %1298 = vmatmul.mubr.f32.gmra.mxu0 %v1199
    %v1299 = vpop.f32.mrf.mxu0
    %v1300 = vadd.f32 0.0, %v1299
    %v1301 = vpop.f32.mrf.mxu0
    %1302 = vdwg.mxu0
    %1303 = vmatprep.subr.mxu0 0.0
    %1304 = vmatpush1.msra.mxu0 %v444
    %1305 = vmatprep.subr.mxu0 0.0
    %1306 = vmatpush1.msra.mxu0 %v443
    %1307 = vmatprep.subr.mxu0 0.0
    %1308 = vmatpush1.msra.mxu0 %v442
    %1309 = vmatprep.subr.mxu0 0.0
    %1310 = vmatpush1.msra.mxu0 %v441
    %1311 = vmatprep.subr.mxu0 0.0
    %1312 = vmatpush1.msra.mxu0 %v440
    %1313 = vmatprep.subr.mxu0 0.0
    %1314 = vmatpush1.msra.mxu0 %v439
    %1315 = vmatprep.subr.mxu0 0.0
    %1316 = vmatpush1.msra.mxu0 %v438
    %1317 = vmatprep.subr.mxu0 0.0
    %1318 = vmatpush1.msra.mxu0 %v437
    %1319 = vmatprep.subr.mxu0 0.0
    %1320 = vmatpush1.msra.mxu0 %v436
    %1321 = vmatprep.subr.mxu0 0.0
    %1322 = vmatpush1.msra.mxu0 %v435
    %1323 = vmatprep.subr.mxu0 0.0
    %1324 = vmatpush1.msra.mxu0 %v434
    %1325 = vmatprep.subr.mxu0 0.0
    %1326 = vmatpush1.msra.mxu0 %v433
    %1327 = vmatprep.subr.mxu0 0.0
    %1328 = vmatpush1.msra.mxu0 %v432
    %1329 = vmatprep.subr.mxu0 0.0
    %1330 = vmatpush1.msra.mxu0 %v431
    %1331 = vmatprep.subr.mxu0 0.0
    %1332 = vmatpush1.msra.mxu0 %v430
    %1333 = vmatprep.subr.mxu0 0.0
    %1334 = vmatpush1.msra.mxu0 %v429
    %1335 = vmatprep.subr.mxu0 0.0
    %1336 = vmatpush2.msra.mxu0 0.0
    %1337 = vmatprep.subr.mxu0 0.0
    %1338 = vmatpush2.msra.mxu0 0.0
    %1339 = vmatprep.subr.mxu0 0.0
    %1340 = vmatpush2.msra.mxu0 0.0
    %1341 = vmatprep.subr.mxu0 0.0
    %1342 = vmatpush2.msra.mxu0 0.0
    %1343 = vmatprep.subr.mxu0 0.0
    %1344 = vmatpush2.msra.mxu0 0.0
    %1345 = vmatprep.subr.mxu0 0.0
    %1346 = vmatpush2.msra.mxu0 0.0
    %1347 = vmatprep.subr.mxu0 0.0
    %1348 = vmatpush2.msra.mxu0 0.0
    %1349 = vmatprep.subr.mxu0 0.0
    %1350 = vmatpush2.msra.mxu0 0.0
    %1351 = vmatprep.subr.mxu0 0.0
    %1352 = vmatpush2.msra.mxu0 0.0
    %1353 = vmatprep.subr.mxu0 0.0
    %1354 = vmatpush2.msra.mxu0 0.0
    %1355 = vmatprep.subr.mxu0 0.0
    %1356 = vmatpush2.msra.mxu0 0.0
    %1357 = vmatprep.subr.mxu0 0.0
    %1358 = vmatpush2.msra.mxu0 0.0
    %1359 = vmatprep.subr.mxu0 0.0
    %1360 = vmatpush2.msra.mxu0 0.0
    %1361 = vmatprep.subr.mxu0 0.0
    %1362 = vmatpush2.msra.mxu0 0.0
    %1363 = vmatprep.subr.mxu0 0.0
    %1364 = vmatpush2.msra.mxu0 0.0
    %1365 = vmatprep.subr.mxu0 0.0
    %1366 = vmatpush2.msra.mxu0 0.0
    %1367 = vmatprep.mubr.f32.mxu0 0.0
    %1368 = vmatmul.mubr.f32.gmra.mxu0 %v1213
    %v1369 = vpop.f32.mrf.mxu0
    %v1370 = vadd.f32 0.0, %v1369
    %v1371 = vpop.f32.mrf.mxu0
    %1372 = vdwg.mxu0
    %1373 = vmatprep.subr.mxu0 0.0
    %1374 = vmatpush1.msra.mxu0 %v460
    %1375 = vmatprep.subr.mxu0 0.0
    %1376 = vmatpush1.msra.mxu0 %v459
    %1377 = vmatprep.subr.mxu0 0.0
    %1378 = vmatpush1.msra.mxu0 %v458
    %1379 = vmatprep.subr.mxu0 0.0
    %1380 = vmatpush1.msra.mxu0 %v457
    %1381 = vmatprep.subr.mxu0 0.0
    %1382 = vmatpush1.msra.mxu0 %v456
    %1383 = vmatprep.subr.mxu0 0.0
    %1384 = vmatpush1.msra.mxu0 %v455
    %1385 = vmatprep.subr.mxu0 0.0
    %1386 = vmatpush1.msra.mxu0 %v454
    %1387 = vmatprep.subr.mxu0 0.0
    %1388 = vmatpush1.msra.mxu0 %v453
    %1389 = vmatprep.subr.mxu0 0.0
    %1390 = vmatpush1.msra.mxu0 %v452
    %1391 = vmatprep.subr.mxu0 0.0
    %1392 = vmatpush1.msra.mxu0 %v451
    %1393 = vmatprep.subr.mxu0 0.0
    %1394 = vmatpush1.msra.mxu0 %v450
    %1395 = vmatprep.subr.mxu0 0.0
    %1396 = vmatpush1.msra.mxu0 %v449
    %1397 = vmatprep.subr.mxu0 0.0
    %1398 = vmatpush1.msra.mxu0 %v448
    %1399 = vmatprep.subr.mxu0 0.0
    %1400 = vmatpush1.msra.mxu0 %v447
    %1401 = vmatprep.subr.mxu0 0.0
    %1402 = vmatpush1.msra.mxu0 %v446
    %1403 = vmatprep.subr.mxu0 0.0
    %1404 = vmatpush1.msra.mxu0 %v445
    %1405 = vmatprep.subr.mxu0 0.0
    %1406 = vmatpush2.msra.mxu0 0.0
    %1407 = vmatprep.subr.mxu0 0.0
    %1408 = vmatpush2.msra.mxu0 0.0
    %1409 = vmatprep.subr.mxu0 0.0
    %1410 = vmatpush2.msra.mxu0 0.0
    %1411 = vmatprep.subr.mxu0 0.0
    %1412 = vmatpush2.msra.mxu0 0.0
    %1413 = vmatprep.subr.mxu0 0.0
    %1414 = vmatpush2.msra.mxu0 0.0
    %1415 = vmatprep.subr.mxu0 0.0
    %1416 = vmatpush2.msra.mxu0 0.0
    %1417 = vmatprep.subr.mxu0 0.0
    %1418 = vmatpush2.msra.mxu0 0.0
    %1419 = vmatprep.subr.mxu0 0.0
    %1420 = vmatpush2.msra.mxu0 0.0
    %1421 = vmatprep.subr.mxu0 0.0
    %1422 = vmatpush2.msra.mxu0 0.0
    %1423 = vmatprep.subr.mxu0 0.0
    %1424 = vmatpush2.msra.mxu0 0.0
    %1425 = vmatprep.subr.mxu0 0.0
    %1426 = vmatpush2.msra.mxu0 0.0
    %1427 = vmatprep.subr.mxu0 0.0
    %1428 = vmatpush2.msra.mxu0 0.0
    %1429 = vmatprep.subr.mxu0 0.0
    %1430 = vmatpush2.msra.mxu0 0.0
    %1431 = vmatprep.subr.mxu0 0.0
    %1432 = vmatpush2.msra.mxu0 0.0
    %1433 = vmatprep.subr.mxu0 0.0
    %1434 = vmatpush2.msra.mxu0 0.0
    %1435 = vmatprep.subr.mxu0 0.0
    %1436 = vmatpush2.msra.mxu0 0.0
    %1437 = vmatprep.mubr.f32.mxu0 0.0
    %1438 = vmatmul.mubr.f32.gmra.mxu0 %v1221
    %v1439 = vpop.f32.mrf.mxu0
    %v1440 = vadd.f32 0.0, %v1439
    %v1441 = vpop.f32.mrf.mxu0
    %1442 = vdwg.mxu0
    %1443 = vmatprep.subr.mxu0 0.0
    %1444 = vmatpush1.msra.mxu0 %v476
    %1445 = vmatprep.subr.mxu0 0.0
    %1446 = vmatpush1.msra.mxu0 %v475
    %1447 = vmatprep.subr.mxu0 0.0
    %1448 = vmatpush1.msra.mxu0 %v474
    %1449 = vmatprep.subr.mxu0 0.0
    %1450 = vmatpush1.msra.mxu0 %v473
    %1451 = vmatprep.subr.mxu0 0.0
    %1452 = vmatpush1.msra.mxu0 %v472
    %1453 = vmatprep.subr.mxu0 0.0
    %1454 = vmatpush1.msra.mxu0 %v471
    %1455 = vmatprep.subr.mxu0 0.0
    %1456 = vmatpush1.msra.mxu0 %v470
    %1457 = vmatprep.subr.mxu0 0.0
    %1458 = vmatpush1.msra.mxu0 %v469
    %1459 = vmatprep.subr.mxu0 0.0
    %1460 = vmatpush1.msra.mxu0 %v468
    %1461 = vmatprep.subr.mxu0 0.0
    %1462 = vmatpush1.msra.mxu0 %v467
    %1463 = vmatprep.subr.mxu0 0.0
    %1464 = vmatpush1.msra.mxu0 %v466
    %1465 = vmatprep.subr.mxu0 0.0
    %1466 = vmatpush1.msra.mxu0 %v465
    %1467 = vmatprep.subr.mxu0 0.0
    %1468 = vmatpush1.msra.mxu0 %v464
    %1469 = vmatprep.subr.mxu0 0.0
    %1470 = vmatpush1.msra.mxu0 %v463
    %1471 = vmatprep.subr.mxu0 0.0
    %1472 = vmatpush1.msra.mxu0 %v462
    %1473 = vmatprep.subr.mxu0 0.0
    %1474 = vmatpush1.msra.mxu0 %v461
    %1475 = vmatprep.subr.mxu0 0.0
    %1476 = vmatpush2.msra.mxu0 0.0
    %1477 = vmatprep.subr.mxu0 0.0
    %1478 = vmatpush2.msra.mxu0 0.0
    %1479 = vmatprep.subr.mxu0 0.0
    %1480 = vmatpush2.msra.mxu0 0.0
    %1481 = vmatprep.subr.mxu0 0.0
    %1482 = vmatpush2.msra.mxu0 0.0
    %1483 = vmatprep.subr.mxu0 0.0
    %1484 = vmatpush2.msra.mxu0 0.0
    %1485 = vmatprep.subr.mxu0 0.0
    %1486 = vmatpush2.msra.mxu0 0.0
    %1487 = vmatprep.subr.mxu0 0.0
    %1488 = vmatpush2.msra.mxu0 0.0
    %1489 = vmatprep.subr.mxu0 0.0
    %1490 = vmatpush2.msra.mxu0 0.0
    %1491 = vmatprep.subr.mxu0 0.0
    %1492 = vmatpush2.msra.mxu0 0.0
    %1493 = vmatprep.subr.mxu0 0.0
    %1494 = vmatpush2.msra.mxu0 0.0
    %1495 = vmatprep.subr.mxu0 0.0
    %1496 = vmatpush2.msra.mxu0 0.0
    %1497 = vmatprep.subr.mxu0 0.0
    %1498 = vmatpush2.msra.mxu0 0.0
    %1499 = vmatprep.subr.mxu0 0.0
    %1500 = vmatpush2.msra.mxu0 0.0
    %1501 = vmatprep.subr.mxu0 0.0
    %1502 = vmatpush2.msra.mxu0 0.0
    %1503 = vmatprep.subr.mxu0 0.0
    %1504 = vmatpush2.msra.mxu0 0.0
    %1505 = vmatprep.subr.mxu0 0.0
    %1506 = vmatpush2.msra.mxu0 0.0
    %1507 = vmatprep.mubr.f32.mxu0 0.0
    %1508 = vmatmul.mubr.f32.gmra.mxu0 %v1223
    %v1509 = vpop.f32.mrf.mxu0
    %v1510 = vadd.f32 0.0, %v1509
    %v1511 = vpop.f32.mrf.mxu0
    %1512 = vdwg.mxu0
    %1513 = vmatprep.subr.mxu0 0.0
    %1514 = vmatpush1.msra.mxu0 %v492
    %1515 = vmatprep.subr.mxu0 0.0
    %1516 = vmatpush1.msra.mxu0 %v491
    %1517 = vmatprep.subr.mxu0 0.0
    %1518 = vmatpush1.msra.mxu0 %v490
    %1519 = vmatprep.subr.mxu0 0.0
    %1520 = vmatpush1.msra.mxu0 %v489
    %1521 = vmatprep.subr.mxu0 0.0
    %1522 = vmatpush1.msra.mxu0 %v488
    %1523 = vmatprep.subr.mxu0 0.0
    %1524 = vmatpush1.msra.mxu0 %v487
    %1525 = vmatprep.subr.mxu0 0.0
    %1526 = vmatpush1.msra.mxu0 %v486
    %1527 = vmatprep.subr.mxu0 0.0
    %1528 = vmatpush1.msra.mxu0 %v485
    %1529 = vmatprep.subr.mxu0 0.0
    %1530 = vmatpush1.msra.mxu0 %v484
    %1531 = vmatprep.subr.mxu0 0.0
    %1532 = vmatpush1.msra.mxu0 %v483
    %1533 = vmatprep.subr.mxu0 0.0
    %1534 = vmatpush1.msra.mxu0 %v482
    %1535 = vmatprep.subr.mxu0 0.0
    %1536 = vmatpush1.msra.mxu0 %v481
    %1537 = vmatprep.subr.mxu0 0.0
    %1538 = vmatpush1.msra.mxu0 %v480
    %1539 = vmatprep.subr.mxu0 0.0
    %1540 = vmatpush1.msra.mxu0 %v479
    %1541 = vmatprep.subr.mxu0 0.0
    %1542 = vmatpush1.msra.mxu0 %v478
    %1543 = vmatprep.subr.mxu0 0.0
    %1544 = vmatpush1.msra.mxu0 %v477
    %1545 = vmatprep.subr.mxu0 0.0
    %1546 = vmatpush2.msra.mxu0 0.0
    %1547 = vmatprep.subr.mxu0 0.0
    %1548 = vmatpush2.msra.mxu0 0.0
    %1549 = vmatprep.subr.mxu0 0.0
    %1550 = vmatpush2.msra.mxu0 0.0
    %1551 = vmatprep.subr.mxu0 0.0
    %1552 = vmatpush2.msra.mxu0 0.0
    %1553 = vmatprep.subr.mxu0 0.0
    %1554 = vmatpush2.msra.mxu0 0.0
    %1555 = vmatprep.subr.mxu0 0.0
    %1556 = vmatpush2.msra.mxu0 0.0
    %1557 = vmatprep.subr.mxu0 0.0
    %1558 = vmatpush2.msra.mxu0 0.0
    %1559 = vmatprep.subr.mxu0 0.0
    %1560 = vmatpush2.msra.mxu0 0.0
    %1561 = vmatprep.subr.mxu0 0.0
    %1562 = vmatpush2.msra.mxu0 0.0
    %1563 = vmatprep.subr.mxu0 0.0
    %1564 = vmatpush2.msra.mxu0 0.0
    %1565 = vmatprep.subr.mxu0 0.0
    %1566 = vmatpush2.msra.mxu0 0.0
    %1567 = vmatprep.subr.mxu0 0.0
    %1568 = vmatpush2.msra.mxu0 0.0
    %1569 = vmatprep.subr.mxu0 0.0
    %1570 = vmatpush2.msra.mxu0 0.0
    %1571 = vmatprep.subr.mxu0 0.0
    %1572 = vmatpush2.msra.mxu0 0.0
    %1573 = vmatprep.subr.mxu0 0.0
    %1574 = vmatpush2.msra.mxu0 0.0
    %1575 = vmatprep.subr.mxu0 0.0
    %1576 = vmatpush2.msra.mxu0 0.0
    %1577 = vmatprep.mubr.f32.mxu0 0.0
    %1578 = vmatmul.mubr.f32.gmra.mxu0 %v1206
    %v1579 = vpop.f32.mrf.mxu0
    %v1580 = vadd.f32 0.0, %v1579
    %v1581 = vpop.f32.mrf.mxu0
    %1582 = vdwg.mxu0
    %1583 = vmatprep.subr.mxu0 0.0
    %1584 = vmatpush1.msra.mxu0 %v508
    %1585 = vmatprep.subr.mxu0 0.0
    %1586 = vmatpush1.msra.mxu0 %v507
    %1587 = vmatprep.subr.mxu0 0.0
    %1588 = vmatpush1.msra.mxu0 %v506
    %1589 = vmatprep.subr.mxu0 0.0
    %1590 = vmatpush1.msra.mxu0 %v505
    %1591 = vmatprep.subr.mxu0 0.0
    %1592 = vmatpush1.msra.mxu0 %v504
    %1593 = vmatprep.subr.mxu0 0.0
    %1594 = vmatpush1.msra.mxu0 %v503
    %1595 = vmatprep.subr.mxu0 0.0
    %1596 = vmatpush1.msra.mxu0 %v502
    %1597 = vmatprep.subr.mxu0 0.0
    %1598 = vmatpush1.msra.mxu0 %v501
    %1599 = vmatprep.subr.mxu0 0.0
    %1600 = vmatpush1.msra.mxu0 %v500
    %1601 = vmatprep.subr.mxu0 0.0
    %1602 = vmatpush1.msra.mxu0 %v499
    %1603 = vmatprep.subr.mxu0 0.0
    %1604 = vmatpush1.msra.mxu0 %v498
    %1605 = vmatprep.subr.mxu0 0.0
    %1606 = vmatpush1.msra.mxu0 %v497
    %1607 = vmatprep.subr.mxu0 0.0
    %1608 = vmatpush1.msra.mxu0 %v496
    %1609 = vmatprep.subr.mxu0 0.0
    %1610 = vmatpush1.msra.mxu0 %v495
    %1611 = vmatprep.subr.mxu0 0.0
    %1612 = vmatpush1.msra.mxu0 %v494
    %1613 = vmatprep.subr.mxu0 0.0
    %1614 = vmatpush1.msra.mxu0 %v493
    %1615 = vmatprep.subr.mxu0 0.0
    %1616 = vmatpush2.msra.mxu0 0.0
    %1617 = vmatprep.subr.mxu0 0.0
    %1618 = vmatpush2.msra.mxu0 0.0
    %1619 = vmatprep.subr.mxu0 0.0
    %1620 = vmatpush2.msra.mxu0 0.0
    %1621 = vmatprep.subr.mxu0 0.0
    %1622 = vmatpush2.msra.mxu0 0.0
    %1623 = vmatprep.subr.mxu0 0.0
    %1624 = vmatpush2.msra.mxu0 0.0
    %1625 = vmatprep.subr.mxu0 0.0
    %1626 = vmatpush2.msra.mxu0 0.0
    %1627 = vmatprep.subr.mxu0 0.0
    %1628 = vmatpush2.msra.mxu0 0.0
    %1629 = vmatprep.subr.mxu0 0.0
    %1630 = vmatpush2.msra.mxu0 0.0
    %1631 = vmatprep.subr.mxu0 0.0
    %1632 = vmatpush2.msra.mxu0 0.0
    %1633 = vmatprep.subr.mxu0 0.0
    %1634 = vmatpush2.msra.mxu0 0.0
    %1635 = vmatprep.subr.mxu0 0.0
    %1636 = vmatpush2.msra.mxu0 0.0
    %1637 = vmatprep.subr.mxu0 0.0
    %1638 = vmatpush2.msra.mxu0 0.0
    %1639 = vmatprep.subr.mxu0 0.0
    %1640 = vmatpush2.msra.mxu0 0.0
    %1641 = vmatprep.subr.mxu0 0.0
    %1642 = vmatpush2.msra.mxu0 0.0
    %1643 = vmatprep.subr.mxu0 0.0
    %1644 = vmatpush2.msra.mxu0 0.0
    %1645 = vmatprep.subr.mxu0 0.0
    %1646 = vmatpush2.msra.mxu0 0.0
    %1647 = vmatprep.mubr.f32.mxu0 0.0
    %1648 = vmatmul.mubr.f32.gmra.mxu0 %v1220
    %v1649 = vpop.f32.mrf.mxu0
    %v1650 = vadd.f32 0.0, %v1649
    %v1651 = vpop.f32.mrf.mxu0
    %1652 = vdwg.mxu0
    %1653 = vmatprep.subr.mxu0 0.0
    %1654 = vmatpush1.msra.mxu0 %v524
    %1655 = vmatprep.subr.mxu0 0.0
    %1656 = vmatpush1.msra.mxu0 %v523
    %1657 = vmatprep.subr.mxu0 0.0
    %1658 = vmatpush1.msra.mxu0 %v522
    %1659 = vmatprep.subr.mxu0 0.0
    %1660 = vmatpush1.msra.mxu0 %v521
    %1661 = vmatprep.subr.mxu0 0.0
    %1662 = vmatpush1.msra.mxu0 %v520
    %1663 = vmatprep.subr.mxu0 0.0
    %1664 = vmatpush1.msra.mxu0 %v519
    %1665 = vmatprep.subr.mxu0 0.0
    %1666 = vmatpush1.msra.mxu0 %v518
    %1667 = vmatprep.subr.mxu0 0.0
    %1668 = vmatpush1.msra.mxu0 %v517
    %1669 = vmatprep.subr.mxu0 0.0
    %1670 = vmatpush1.msra.mxu0 %v516
    %1671 = vmatprep.subr.mxu0 0.0
    %1672 = vmatpush1.msra.mxu0 %v515
    %1673 = vmatprep.subr.mxu0 0.0
    %1674 = vmatpush1.msra.mxu0 %v514
    %1675 = vmatprep.subr.mxu0 0.0
    %1676 = vmatpush1.msra.mxu0 %v513
    %1677 = vmatprep.subr.mxu0 0.0
    %1678 = vmatpush1.msra.mxu0 %v512
    %1679 = vmatprep.subr.mxu0 0.0
    %1680 = vmatpush1.msra.mxu0 %v511
    %1681 = vmatprep.subr.mxu0 0.0
    %1682 = vmatpush1.msra.mxu0 %v510
    %1683 = vmatprep.subr.mxu0 0.0
    %1684 = vmatpush1.msra.mxu0 %v509
    %1685 = vmatprep.subr.mxu0 0.0
    %1686 = vmatpush2.msra.mxu0 0.0
    %1687 = vmatprep.subr.mxu0 0.0
    %1688 = vmatpush2.msra.mxu0 0.0
    %1689 = vmatprep.subr.mxu0 0.0
    %1690 = vmatpush2.msra.mxu0 0.0
    %1691 = vmatprep.subr.mxu0 0.0
    %1692 = vmatpush2.msra.mxu0 0.0
    %1693 = vmatprep.subr.mxu0 0.0
    %1694 = vmatpush2.msra.mxu0 0.0
    %1695 = vmatprep.subr.mxu0 0.0
    %1696 = vmatpush2.msra.mxu0 0.0
    %1697 = vmatprep.subr.mxu0 0.0
    %1698 = vmatpush2.msra.mxu0 0.0
    %1699 = vmatprep.subr.mxu0 0.0
    %1700 = vmatpush2.msra.mxu0 0.0
    %1701 = vmatprep.subr.mxu0 0.0
    %1702 = vmatpush2.msra.mxu0 0.0
    %1703 = vmatprep.subr.mxu0 0.0
    %1704 = vmatpush2.msra.mxu0 0.0
    %1705 = vmatprep.subr.mxu0 0.0
    %1706 = vmatpush2.msra.mxu0 0.0
    %1707 = vmatprep.subr.mxu0 0.0
    %1708 = vmatpush2.msra.mxu0 0.0
    %1709 = vmatprep.subr.mxu0 0.0
    %1710 = vmatpush2.msra.mxu0 0.0
    %1711 = vmatprep.subr.mxu0 0.0
    %1712 = vmatpush2.msra.mxu0 0.0
    %1713 = vmatprep.subr.mxu0 0.0
    %1714 = vmatpush2.msra.mxu0 0.0
    %1715 = vmatprep.subr.mxu0 0.0
    %1716 = vmatpush2.msra.mxu0 0.0
    %1717 = vmatprep.mubr.f32.mxu0 0.0
    %1718 = vmatmul.mubr.f32.gmra.mxu0 %v1222
    %v1719 = vpop.f32.mrf.mxu0
    %v1720 = vadd.f32 0.0, %v1719
    %v1721 = vpop.f32.mrf.mxu0
    %1722 = vdwg.mxu0
    %1723 = vmatprep.subr.mxu0 0.0
    %1724 = vmatpush1.msra.mxu0 %v540
    %1725 = vmatprep.subr.mxu0 0.0
    %1726 = vmatpush1.msra.mxu0 %v539
    %1727 = vmatprep.subr.mxu0 0.0
    %1728 = vmatpush1.msra.mxu0 %v538
    %1729 = vmatprep.subr.mxu0 0.0
    %1730 = vmatpush1.msra.mxu0 %v537
    %1731 = vmatprep.subr.mxu0 0.0
    %1732 = vmatpush1.msra.mxu0 %v536
    %1733 = vmatprep.subr.mxu0 0.0
    %1734 = vmatpush1.msra.mxu0 %v535
    %1735 = vmatprep.subr.mxu0 0.0
    %1736 = vmatpush1.msra.mxu0 %v534
    %1737 = vmatprep.subr.mxu0 0.0
    %1738 = vmatpush1.msra.mxu0 %v533
    %1739 = vmatprep.subr.mxu0 0.0
    %1740 = vmatpush1.msra.mxu0 %v532
    %1741 = vmatprep.subr.mxu0 0.0
    %1742 = vmatpush1.msra.mxu0 %v531
    %1743 = vmatprep.subr.mxu0 0.0
    %1744 = vmatpush1.msra.mxu0 %v530
    %1745 = vmatprep.subr.mxu0 0.0
    %1746 = vmatpush1.msra.mxu0 %v529
    %1747 = vmatprep.subr.mxu0 0.0
    %1748 = vmatpush1.msra.mxu0 %v528
    %1749 = vmatprep.subr.mxu0 0.0
    %1750 = vmatpush1.msra.mxu0 %v527
    %1751 = vmatprep.subr.mxu0 0.0
    %1752 = vmatpush1.msra.mxu0 %v526
    %1753 = vmatprep.subr.mxu0 0.0
    %1754 = vmatpush1.msra.mxu0 %v525
    %1755 = vmatprep.subr.mxu0 0.0
    %1756 = vmatpush2.msra.mxu0 0.0
    %1757 = vmatprep.subr.mxu0 0.0
    %1758 = vmatpush2.msra.mxu0 0.0
    %1759 = vmatprep.subr.mxu0 0.0
    %1760 = vmatpush2.msra.mxu0 0.0
    %1761 = vmatprep.subr.mxu0 0.0
    %1762 = vmatpush2.msra.mxu0 0.0
    %1763 = vmatprep.subr.mxu0 0.0
    %1764 = vmatpush2.msra.mxu0 0.0
    %1765 = vmatprep.subr.mxu0 0.0
    %1766 = vmatpush2.msra.mxu0 0.0
    %1767 = vmatprep.subr.mxu0 0.0
    %1768 = vmatpush2.msra.mxu0 0.0
    %1769 = vmatprep.subr.mxu0 0.0
    %1770 = vmatpush2.msra.mxu0 0.0
    %1771 = vmatprep.subr.mxu0 0.0
    %1772 = vmatpush2.msra.mxu0 0.0
    %1773 = vmatprep.subr.mxu0 0.0
    %1774 = vmatpush2.msra.mxu0 0.0
    %1775 = vmatprep.subr.mxu0 0.0
    %1776 = vmatpush2.msra.mxu0 0.0
    %1777 = vmatprep.subr.mxu0 0.0
    %1778 = vmatpush2.msra.mxu0 0.0
    %1779 = vmatprep.subr.mxu0 0.0
    %1780 = vmatpush2.msra.mxu0 0.0
    %1781 = vmatprep.subr.mxu0 0.0
    %1782 = vmatpush2.msra.mxu0 0.0
    %1783 = vmatprep.subr.mxu0 0.0
    %1784 = vmatpush2.msra.mxu0 0.0
    %1785 = vmatprep.subr.mxu0 0.0
    %1786 = vmatpush2.msra.mxu0 0.0
    %1787 = vmatprep.mubr.f32.mxu0 0.0
    %1788 = vmatmul.mubr.f32.gmra.mxu0 %v1224
    %v1789 = vpop.f32.mrf.mxu0
    %v1790 = vadd.f32 0.0, %v1789
    %v1791 = vpop.f32.mrf.mxu0
    %1792 = vdwg.mxu0
    %v1793 = vsel %vm1159, %v1300, 0.0
    %v1794 = vsel %vm1159, %v1370, 0.0
    %v1795 = vadd.f32 %v1793, %v1794
    %v1796 = vsel %vm1159, %v1440, 0.0
    %v1797 = vadd.f32 %v1795, %v1796
    %v1798 = vsel %vm1159, %v1510, 0.0
    %v1799 = vadd.f32 %v1797, %v1798
    %v1800 = vsel %vm1159, %v1580, 0.0
    %v1801 = vadd.f32 %v1799, %v1800
    %v1802 = vsel %vm1159, %v1650, 0.0
    %v1803 = vadd.f32 %v1801, %v1802
    %v1804 = vsel %vm1159, %v1720, 0.0
    %v1805 = vadd.f32 %v1803, %v1804
    %v1806 = vsel %vm1159, %v1790, 0.0
    %v1807 = vadd.f32 %v1805, %v1806
    %v1809 = vrot.slane %v1807, 7
    %v1811 = vsel %vm1159, %v1174, %v1809
    %v1812 = vld [vmem:[%s1] sm:$0x3]
    %v1813 = vld [vmem:[%s5] sm:$0x3f]
    %vm1814 = vcmask 48128
    %v1816 = vsel %vm1814, %v1812, 0
    %vm1818 = vcmask 1045504
    %v1820 = vsel %vm1818, %v1813, 0
    %1822 = vmatprep.subr.mxu0 0.0
    %1823 = vmatpush1.msra.mxu0 0.0
    %1824 = vmatprep.subr.mxu0 0.0
    %1825 = vmatpush1.msra.mxu0 0.0
    %1826 = vmatprep.subr.mxu0 0.0
    %1827 = vmatpush1.msra.mxu0 0.0
    %1828 = vmatprep.subr.mxu0 0.0
    %1829 = vmatpush1.msra.mxu0 0.0
    %1830 = vmatprep.subr.mxu0 0.0
    %1831 = vmatpush1.msra.mxu0 0.0
    %1832 = vmatprep.subr.mxu0 0.0
    %1833 = vmatpush1.msra.mxu0 0.0
    %1834 = vmatprep.subr.mxu0 0.0
    %1835 = vmatpush1.msra.mxu0 0.0
    %1836 = vmatprep.subr.mxu0 0.0
    %1837 = vmatpush1.msra.mxu0 0.0
    %1838 = vmatprep.subr.mxu0 0.0
    %1839 = vmatpush1.msra.mxu0 0.0
    %1840 = vmatprep.subr.mxu0 0.0
    %1841 = vmatpush1.msra.mxu0 0.0
    %1842 = vmatprep.subr.mxu0 0.0
    %1843 = vmatpush1.msra.mxu0 0.0
    %1844 = vmatprep.subr.mxu0 0.0
    %1845 = vmatpush1.msra.mxu0 0.0
    %1846 = vmatprep.subr.mxu0 0.0
    %1847 = vmatpush1.msra.mxu0 0.0
    %1848 = vmatprep.subr.mxu0 0.0
    %1849 = vmatpush1.msra.mxu0 0.0
    %1850 = vmatprep.subr.mxu0 0.0
    %1851 = vmatpush1.msra.mxu0 0.0
    %1852 = vmatprep.subr.mxu0 0.0
    %1853 = vmatpush1.msra.mxu0 %v1820
    %1854 = vmatprep.subr.mxu0 0.0
    %1855 = vmatpush2.msra.mxu0 0.0
    %1856 = vmatprep.subr.mxu0 0.0
    %1857 = vmatpush2.msra.mxu0 0.0
    %1858 = vmatprep.subr.mxu0 0.0
    %1859 = vmatpush2.msra.mxu0 0.0
    %1860 = vmatprep.subr.mxu0 0.0
    %1861 = vmatpush2.msra.mxu0 0.0
    %1862 = vmatprep.subr.mxu0 0.0
    %1863 = vmatpush2.msra.mxu0 0.0
    %1864 = vmatprep.subr.mxu0 0.0
    %1865 = vmatpush2.msra.mxu0 0.0
    %1866 = vmatprep.subr.mxu0 0.0
    %1867 = vmatpush2.msra.mxu0 0.0
    %1868 = vmatprep.subr.mxu0 0.0
    %1869 = vmatpush2.msra.mxu0 0.0
    %1870 = vmatprep.subr.mxu0 0.0
    %1871 = vmatpush2.msra.mxu0 0.0
    %1872 = vmatprep.subr.mxu0 0.0
    %1873 = vmatpush2.msra.mxu0 0.0
    %1874 = vmatprep.subr.mxu0 0.0
    %1875 = vmatpush2.msra.mxu0 0.0
    %1876 = vmatprep.subr.mxu0 0.0
    %1877 = vmatpush2.msra.mxu0 0.0
    %1878 = vmatprep.subr.mxu0 0.0
    %1879 = vmatpush2.msra.mxu0 0.0
    %1880 = vmatprep.subr.mxu0 0.0
    %1881 = vmatpush2.msra.mxu0 0.0
    %1882 = vmatprep.subr.mxu0 0.0
    %1883 = vmatpush2.msra.mxu0 0.0
    %1884 = vmatprep.subr.mxu0 0.0
    %1885 = vmatpush2.msra.mxu0 0.0
    %1886 = vmatprep.mubr.f32.mxu0 0.0
    %1887 = vmatmul.mubr.f32.gmra.mxu0 %v1816
    %v1888 = vpop.f32.mrf.mxu0
    %v1889 = vadd.f32 0.0, %v1888
    %v1890 = vpop.f32.mrf.mxu0
    %1891 = vdwg.mxu0
    %v1892 = vadd.f32 %v1811, %v1889
    %v1893 = vld [vmem:[%s6] sm:$0x1]
    %v1895 = vlaneseq
    %v1896 = vshrl.u32 %v1895, 7
    %v1897 = vsub.s32 0, %v1896
    %v1898 = vrot.slane %v1893, %v1897
    %v1900 = vadd.f32 %v1892, %v1898
    %vm1901 = vcmp.gt.f32.partialorder %v1900, 0.0
    %v1902 = vmul.f32 %v1900, 0.01
    %v1903 = vsel %vm1901, %v1900, %v1902
    %v1904 = vld [vmem:[%s7] sm:$0xff]
    %v1905 = vld [vmem:[%s7 + $0x8] sm:$0xff]
    %v1906 = vld [vmem:[%s7 + $0x10] sm:$0xff]
    %v1907 = vld [vmem:[%s7 + $0x18] sm:$0xff]
    %v1908 = vld [vmem:[%s7 + $0x20] sm:$0xff]
    %v1909 = vld [vmem:[%s7 + $0x28] sm:$0xff]
    %v1910 = vld [vmem:[%s7 + $0x30] sm:$0xff]
    %v1911 = vld [vmem:[%s7 + $0x38] sm:$0xff]
    %v1912 = vld [vmem:[%s7 + $0x40] sm:$0xff]
    %v1913 = vld [vmem:[%s7 + $0x48] sm:$0xff]
    %v1914 = vld [vmem:[%s7 + $0x50] sm:$0xff]
    %v1915 = vld [vmem:[%s7 + $0x58] sm:$0xff]
    %v1916 = vld [vmem:[%s7 + $0x60] sm:$0xff]
    %v1917 = vld [vmem:[%s7 + $0x68] sm:$0xff]
    %v1918 = vld [vmem:[%s7 + $0x70] sm:$0xff]
    %v1919 = vld [vmem:[%s7 + $0x78] sm:$0xff]
    %v1920 = vld [vmem:[%s8] sm:$0x1]
    %v1922 = vlaneseq
    %v1923 = vshrl.u32 %v1922, 7
    %v1924 = vsub.s32 0, %v1923
    %v1925 = vrot.slane %v1920, %v1924
    %1927 = vmatprep.subr.mxu0 0.0
    %1928 = vmatpush1.msra.mxu0 %v1919
    %1929 = vmatprep.subr.mxu0 0.0
    %1930 = vmatpush1.msra.mxu0 %v1918
    %1931 = vmatprep.subr.mxu0 0.0
    %1932 = vmatpush1.msra.mxu0 %v1917
    %1933 = vmatprep.subr.mxu0 0.0
    %1934 = vmatpush1.msra.mxu0 %v1916
    %1935 = vmatprep.subr.mxu0 0.0
    %1936 = vmatpush1.msra.mxu0 %v1915
    %1937 = vmatprep.subr.mxu0 0.0
    %1938 = vmatpush1.msra.mxu0 %v1914
    %1939 = vmatprep.subr.mxu0 0.0
    %1940 = vmatpush1.msra.mxu0 %v1913
    %1941 = vmatprep.subr.mxu0 0.0
    %1942 = vmatpush1.msra.mxu0 %v1912
    %1943 = vmatprep.subr.mxu0 0.0
    %1944 = vmatpush1.msra.mxu0 %v1911
    %1945 = vmatprep.subr.mxu0 0.0
    %1946 = vmatpush1.msra.mxu0 %v1910
    %1947 = vmatprep.subr.mxu0 0.0
    %1948 = vmatpush1.msra.mxu0 %v1909
    %1949 = vmatprep.subr.mxu0 0.0
    %1950 = vmatpush1.msra.mxu0 %v1908
    %1951 = vmatprep.subr.mxu0 0.0
    %1952 = vmatpush1.msra.mxu0 %v1907
    %1953 = vmatprep.subr.mxu0 0.0
    %1954 = vmatpush1.msra.mxu0 %v1906
    %1955 = vmatprep.subr.mxu0 0.0
    %1956 = vmatpush1.msra.mxu0 %v1905
    %1957 = vmatprep.subr.mxu0 0.0
    %1958 = vmatpush1.msra.mxu0 %v1904
    %1959 = vmatprep.subr.mxu0 0.0
    %1960 = vmatpush2.msra.mxu0 0.0
    %1961 = vmatprep.subr.mxu0 0.0
    %1962 = vmatpush2.msra.mxu0 0.0
    %1963 = vmatprep.subr.mxu0 0.0
    %1964 = vmatpush2.msra.mxu0 0.0
    %1965 = vmatprep.subr.mxu0 0.0
    %1966 = vmatpush2.msra.mxu0 0.0
    %1967 = vmatprep.subr.mxu0 0.0
    %1968 = vmatpush2.msra.mxu0 0.0
    %1969 = vmatprep.subr.mxu0 0.0
    %1970 = vmatpush2.msra.mxu0 0.0
    %1971 = vmatprep.subr.mxu0 0.0
    %1972 = vmatpush2.msra.mxu0 0.0
    %1973 = vmatprep.subr.mxu0 0.0
    %1974 = vmatpush2.msra.mxu0 0.0
    %1975 = vmatprep.subr.mxu0 0.0
    %1976 = vmatpush2.msra.mxu0 0.0
    %1977 = vmatprep.subr.mxu0 0.0
    %1978 = vmatpush2.msra.mxu0 0.0
    %1979 = vmatprep.subr.mxu0 0.0
    %1980 = vmatpush2.msra.mxu0 0.0
    %1981 = vmatprep.subr.mxu0 0.0
    %1982 = vmatpush2.msra.mxu0 0.0
    %1983 = vmatprep.subr.mxu0 0.0
    %1984 = vmatpush2.msra.mxu0 0.0
    %1985 = vmatprep.subr.mxu0 0.0
    %1986 = vmatpush2.msra.mxu0 0.0
    %1987 = vmatprep.subr.mxu0 0.0
    %1988 = vmatpush2.msra.mxu0 0.0
    %1989 = vmatprep.subr.mxu0 0.0
    %1990 = vmatpush2.msra.mxu0 0.0
    %1991 = vmatprep.mubr.f32.mxu0 0.0
    %1992 = vmatmul.mubr.f32.gmra.mxu0 %v1903
    %v1993 = vpop.f32.mrf.mxu0
    %v1994 = vadd.f32 %v1925, %v1993
    %v1995 = vpop.f32.mrf.mxu0
    %1996 = vdwg.mxu0
    %v1997 = vmax.f32 %v1994, 0.0
    %v1998 = vld [vmem:[%s9] sm:$0xff]
    %v1999 = vld [vmem:[%s9 + $0x8] sm:$0xff]
    %v2000 = vld [vmem:[%s9 + $0x10] sm:$0xff]
    %v2001 = vld [vmem:[%s9 + $0x18] sm:$0xff]
    %v2002 = vld [vmem:[%s9 + $0x20] sm:$0xff]
    %v2003 = vld [vmem:[%s9 + $0x28] sm:$0xff]
    %v2004 = vld [vmem:[%s9 + $0x30] sm:$0xff]
    %v2005 = vld [vmem:[%s9 + $0x38] sm:$0xff]
    %v2006 = vld [vmem:[%s9 + $0x40] sm:$0xff]
    %v2007 = vld [vmem:[%s9 + $0x48] sm:$0xff]
    %v2008 = vld [vmem:[%s9 + $0x50] sm:$0xff]
    %v2009 = vld [vmem:[%s9 + $0x58] sm:$0xff]
    %v2010 = vld [vmem:[%s9 + $0x60] sm:$0xff]
    %v2011 = vld [vmem:[%s9 + $0x68] sm:$0xff]
    %v2012 = vld [vmem:[%s9 + $0x70] sm:$0xff]
    %v2013 = vld [vmem:[%s9 + $0x78] sm:$0xff]
    %v2014 = vld [vmem:[%s10] sm:$0x1]
    %v2016 = vlaneseq
    %v2017 = vshrl.u32 %v2016, 7
    %v2018 = vsub.s32 0, %v2017
    %v2019 = vrot.slane %v2014, %v2018
    %2021 = vmatprep.subr.mxu0 0.0
    %2022 = vmatpush1.msra.mxu0 %v2013
    %2023 = vmatprep.subr.mxu0 0.0
    %2024 = vmatpush1.msra.mxu0 %v2012
    %2025 = vmatprep.subr.mxu0 0.0
    %2026 = vmatpush1.msra.mxu0 %v2011
    %2027 = vmatprep.subr.mxu0 0.0
    %2028 = vmatpush1.msra.mxu0 %v2010
    %2029 = vmatprep.subr.mxu0 0.0
    %2030 = vmatpush1.msra.mxu0 %v2009
    %2031 = vmatprep.subr.mxu0 0.0
    %2032 = vmatpush1.msra.mxu0 %v2008
    %2033 = vmatprep.subr.mxu0 0.0
    %2034 = vmatpush1.msra.mxu0 %v2007
    %2035 = vmatprep.subr.mxu0 0.0
    %2036 = vmatpush1.msra.mxu0 %v2006
    %2037 = vmatprep.subr.mxu0 0.0
    %2038 = vmatpush1.msra.mxu0 %v2005
    %2039 = vmatprep.subr.mxu0 0.0
    %2040 = vmatpush1.msra.mxu0 %v2004
    %2041 = vmatprep.subr.mxu0 0.0
    %2042 = vmatpush1.msra.mxu0 %v2003
    %2043 = vmatprep.subr.mxu0 0.0
    %2044 = vmatpush1.msra.mxu0 %v2002
    %2045 = vmatprep.subr.mxu0 0.0
    %2046 = vmatpush1.msra.mxu0 %v2001
    %2047 = vmatprep.subr.mxu0 0.0
    %2048 = vmatpush1.msra.mxu0 %v2000
    %2049 = vmatprep.subr.mxu0 0.0
    %2050 = vmatpush1.msra.mxu0 %v1999
    %2051 = vmatprep.subr.mxu0 0.0
    %2052 = vmatpush1.msra.mxu0 %v1998
    %2053 = vmatprep.subr.mxu0 0.0
    %2054 = vmatpush2.msra.mxu0 0.0
    %2055 = vmatprep.subr.mxu0 0.0
    %2056 = vmatpush2.msra.mxu0 0.0
    %2057 = vmatprep.subr.mxu0 0.0
    %2058 = vmatpush2.msra.mxu0 0.0
    %2059 = vmatprep.subr.mxu0 0.0
    %2060 = vmatpush2.msra.mxu0 0.0
    %2061 = vmatprep.subr.mxu0 0.0
    %2062 = vmatpush2.msra.mxu0 0.0
    %2063 = vmatprep.subr.mxu0 0.0
    %2064 = vmatpush2.msra.mxu0 0.0
    %2065 = vmatprep.subr.mxu0 0.0
    %2066 = vmatpush2.msra.mxu0 0.0
    %2067 = vmatprep.subr.mxu0 0.0
    %2068 = vmatpush2.msra.mxu0 0.0
    %2069 = vmatprep.subr.mxu0 0.0
    %2070 = vmatpush2.msra.mxu0 0.0
    %2071 = vmatprep.subr.mxu0 0.0
    %2072 = vmatpush2.msra.mxu0 0.0
    %2073 = vmatprep.subr.mxu0 0.0
    %2074 = vmatpush2.msra.mxu0 0.0
    %2075 = vmatprep.subr.mxu0 0.0
    %2076 = vmatpush2.msra.mxu0 0.0
    %2077 = vmatprep.subr.mxu0 0.0
    %2078 = vmatpush2.msra.mxu0 0.0
    %2079 = vmatprep.subr.mxu0 0.0
    %2080 = vmatpush2.msra.mxu0 0.0
    %2081 = vmatprep.subr.mxu0 0.0
    %2082 = vmatpush2.msra.mxu0 0.0
    %2083 = vmatprep.subr.mxu0 0.0
    %2084 = vmatpush2.msra.mxu0 0.0
    %2085 = vmatprep.mubr.f32.mxu0 0.0
    %2086 = vmatmul.mubr.f32.gmra.mxu0 %v1997
    %v2087 = vpop.f32.mrf.mxu0
    %v2088 = vadd.f32 %v2019, %v2087
    %v2089 = vpop.f32.mrf.mxu0
    %2090 = vdwg.mxu0
    %2091 = vst [vmem:[#allocation2] sm:$0x3] %v2088
    // Predicated region
    $region46: #{dqn_forward.1} parent=1 // pred_check
      _
    $region47: #{dqn_forward.1} parent=1 // pred_check_branch
      %2093 = sbr.rel (0) target = $region49
    $region48: #{dqn_forward.1} parent=1 // pred_region
      %s2095 = ssub.s32 32, 32
      %2096 = vsyncadd [#allocation3], %s2095
      %s2098 = sshll.u32 [#allocation2], 4
      %s2099 = int_to_ptr.vmem [resolvable:$true] %s2098
      %2101 = dma.vmem_to_hbm [thread:$0]  %s2099, 32, %s11, [#allocation3]
    $region49: #{dqn_forward.1} parent=1 // pred_fallthru
      _
    // Predicated region
    $region50: #{dqn_forward.1} parent=1 // pred_check
      _
    $region51: #{dqn_forward.1} parent=1 // pred_check_branch
      %2103 = sbr.rel (0) target = $region53
    $region52: #{dqn_forward.1} parent=1 // pred_region
      %2104 = dma.done [#allocation3], 32
    $region53: #{dqn_forward.1} parent=1 // pred_fallthru
      _
    %2105 = vsyncpa [#allocation3], 1

</llo_original>
